<compile_context>
chip_gen: v7x
topology: tpu7x:2x2x1
jax: 0.10.0
libtpu: 0.0.40
codegen_flags: <defaults>
</compile_context>

<pallas_src>
import jax
import jax.numpy as jnp
from jax import lax
from jax.experimental import pallas as pl
from jax.experimental.pallas import tpu as pltpu

_BN_EPS = 1e-5


@jax.jit
def s122_forward(x, conv_w, bn_gamma, bn_beta):
    """Pallas TPU implementation of S122.forward (avg squeeze, BN, sigmoid)."""
    B, C, T, H, W = x.shape
    # TODO(synk): only the exact-2x adaptive pooling path (even H, W >= 4) is implemented;
    # PyTorch's overlapping adaptive windows for odd / tiny H, W are not.
    assert H % 2 == 0 and W % 2 == 0 and H >= 4 and W >= 4
    Hn, Wn = H // 2, W // 2
    HW, S = H * W, Hn * Wn
    CT, BCT = C * T, B * C * T
    f32 = jnp.float32

    # ---- constant operator matrices (constant-folded by XLA under jit) ----------------
    # sel[(h*W+w), (i*Wn+j)] = True  iff  (h//2, w//2) == (i, j)
    hw_h = jnp.arange(HW) // W
    hw_w = jnp.arange(HW) % W
    s_i = jnp.arange(S) // Wn
    s_j = jnp.arange(S) % Wn
    sel = (hw_h[:, None] // 2 == s_i[None, :]) & (hw_w[:, None] // 2 == s_j[None, :])
    pool_mat = sel.astype(f32) * 0.25            # (HW, S)  2x2 average pool
    up_mat = sel.astype(f32).T                   # (S, HW)  2x nearest-neighbor upsample

    # conv_mat[(co*T+t), (ci*T+t')] = w[co, ci, t'-t+1] for |t'-t| <= 1 else 0 (zero pad in T)
    w3 = conv_w.reshape(C, C, 3).astype(f32)
    t_o = jnp.arange(T)[:, None]
    t_i = jnp.arange(T)[None, :]
    k = t_i - t_o + 1                            # (T, T) tap index
    valid = (k >= 0) & (k <= 2)
    m4 = jnp.where(valid[None, None], w3[:, :, jnp.clip(k, 0, 2)], 0.0)   # (C, C, T, T)
    conv_mat = jnp.transpose(m4, (0, 2, 1, 3)).reshape(CT, CT)
    # Block-diagonal over batches so the whole conv is one MXU matmul at small B.
    # TODO(synk): at large B switch to a per-batch (CT,CT) loop to avoid the B^2 blowup.
    conv_bd = jnp.kron(jnp.eye(B, dtype=f32), conv_mat)                   # (BCT, BCT)

    # Channel-grouping 0/1 matrix for BN stats: rows i,j belong to the same channel.
    rows = jnp.arange(BCT)
    ch = (rows % CT) // T
    chan_mat = (ch[:, None] == ch[None, :]).astype(f32)                   # (BCT, BCT)

    # BN affine params pre-expanded to row granularity: (BCT, 2) = [gamma | beta]
    gamma_r = jnp.tile(jnp.repeat(bn_gamma.astype(f32), T), B)
    beta_r = jnp.tile(jnp.repeat(bn_beta.astype(f32), T), B)
    bn_rows = jnp.stack([gamma_r, beta_r], axis=1)                        # (BCT, 2)

    xr = x.reshape(BCT, HW)                      # free reshape -> lane-dense input view
    inv_n = 1.0 / float(B * T * S)

    def kernel(x_ref, pool_ref, conv_ref, up_ref, chan_ref, bn_ref, o_ref):
        xb = x_ref[...].astype(jnp.float32)                                       # (BCT, HW)
        # 2x2 average pool + temporal conv (channel mixing), both single MXU matmuls.
        pooled = jnp.dot(xb, pool_ref[...], preferred_element_type=jnp.float32)   # (BCT, S)
        z = jnp.dot(conv_ref[...], pooled, preferred_element_type=jnp.float32)    # (BCT, S)

        # ---- BatchNorm statistics: lane-reduce first, then channel-group matvec -------
        rowsum = jnp.sum(z, axis=-1, keepdims=True)                               # (BCT, 1)
        mean_r = jnp.dot(chan_ref[...], rowsum,
                         preferred_element_type=jnp.float32) * inv_n              # (BCT, 1)
        d = z - mean_r                                                            # two-pass
        sqrow = jnp.sum(d * d, axis=-1, keepdims=True)                            # (BCT, 1)
        var_r = jnp.dot(chan_ref[...], sqrow,
                        preferred_element_type=jnp.float32) * inv_n               # (BCT, 1)

        scale_r = bn_ref[:, 0:1] * lax.rsqrt(var_r + _BN_EPS)
        shift_r = bn_ref[:, 1:2] - mean_r * scale_r

        # Sigmoid BEFORE the upsample (replication commutes with elementwise maps).
        v = z * scale_r + shift_r
        sg = 1.0 / (1.0 + jnp.exp(-v))                                            # (BCT, S)
        up = jnp.dot(sg, up_ref[...], preferred_element_type=jnp.float32)         # (BCT, HW)
        o_ref[...] = up.astype(o_ref.dtype)

    # ---- residency-based VMEM budget (safe on v7x's 64 MiB) + cost estimate -----------
    resident_bytes = 4 * (BCT * HW        # x block
                          + HW * S        # pool operator
                          + BCT * BCT     # block-diag conv operator
                          + S * HW        # upsample operator
                          + BCT * BCT     # channel-grouping operator
                          + BCT * 2       # BN rows
                          + BCT * HW)     # output block
    vmem_limit = int(min(60 * (1 << 20), max(4 * (1 << 20), 8 * resident_bytes)))

    flops = (2 * BCT * HW * S            # pool
             + 2 * BCT * BCT * S         # temporal conv (block-diag)
             + 2 * 2 * BCT * BCT         # BN mean / var group matvecs
             + 2 * BCT * S * HW          # upsample
             + 12 * BCT * S)             # BN affine + sigmoid elementwise
    cost = pl.CostEstimate(
        flops=int(flops),
        transcendentals=int(BCT * S + BCT),
        bytes_accessed=int(2 * resident_bytes),
    )

    out = pl.pallas_call(
        kernel,
        out_shape=jax.ShapeDtypeStruct((BCT, HW), x.dtype),
        grid_spec=pltpu.PrefetchScalarGridSpec(
            num_scalar_prefetch=0,
            grid=(1,),                                         # single fused step
            in_specs=[
                pl.BlockSpec((BCT, HW), lambda i: (0, 0)),     # x, lane-dense view
                pl.BlockSpec((HW, S), lambda i: (0, 0)),       # pooling matrix
                pl.BlockSpec((BCT, BCT), lambda i: (0, 0)),    # block-diag temporal conv
                pl.BlockSpec((S, HW), lambda i: (0, 0)),       # upsample matrix
                pl.BlockSpec((BCT, BCT), lambda i: (0, 0)),    # channel-grouping matrix
                pl.BlockSpec((BCT, 2), lambda i: (0, 0)),      # [gamma | beta] per row
            ],
            out_specs=pl.BlockSpec((BCT, HW), lambda i: (0, 0)),
        ),
        compiler_params=pltpu.CompilerParams(
            dimension_semantics=("arbitrary",),
            vmem_limit_bytes=vmem_limit,
        ),
        cost_estimate=cost,
    )(xr, pool_mat, conv_bd, up_mat, chan_mat, bn_rows)

    return out.reshape(B, C, T, H, W)


if __name__ == "__main__":
    key = jax.random.PRNGKey(0)
    kx, kw = jax.random.split(key)

    B, C, T, H, W = 2, 4, 8, 16, 16              # (batch, inplanes, num_segments, h, w)
    x = jax.random.normal(kx, (B, C, T, H, W), jnp.float32)

    # Conv3d(C, C, kernel=(3,1,1), pad=(1,0,0), bias=False) with xavier_normal_ init.
    fan = C * 3 * 1 * 1
    xavier_std = (2.0 / (fan + fan)) ** 0.5
    conv_w = xavier_std * jax.random.normal(kw, (C, C, 3, 1, 1), jnp.float32)
    # BatchNorm3d(C): weight=1, bias=0 (per nn.init.constant_ in __init__).
    bn_gamma = jnp.ones((C,), jnp.float32)
    bn_beta = jnp.zeros((C,), jnp.float32)
    # TODO(synk): BatchNorm running-stat (momentum) buffer updates are training side
    # effects that do not affect the forward output; not materialized here.

    out = jax.block_until_ready(s122_forward(x, conv_w, bn_gamma, bn_beta))
    assert out.shape == (B, C, T, H, W)

    # ---- plain-JAX reference for sanity -------------------------------------------------
    Hn, Wn = H // 2, W // 2
    xp = x.reshape(B, C, T, Hn, 2, Wn, 2).mean(axis=(4, 6))          # adaptive avg pool = 2x2
    w3 = conv_w.reshape(C, C, 3)
    ypad = jnp.pad(xp, ((0, 0), (0, 0), (1, 1), (0, 0), (0, 0)))
    z = sum(jnp.einsum('oi,bithw->bothw', w3[:, :, kk], ypad[:, :, kk:kk + T],
                       precision=lax.Precision.HIGHEST) for kk in range(3))
    mu = z.mean(axis=(0, 2, 3, 4), keepdims=True)
    var = ((z - mu) ** 2).mean(axis=(0, 2, 3, 4), keepdims=True)     # biased var (train mode)
    zn = (z - mu) / jnp.sqrt(var + _BN_EPS)
    zn = zn * bn_gamma.reshape(1, C, 1, 1, 1) + bn_beta.reshape(1, C, 1, 1, 1)
    sg = jax.nn.sigmoid(zn)
    ref = jnp.repeat(jnp.repeat(sg, 2, axis=3), 2, axis=4)           # adaptive upsample = 2x NN

    err = float(jnp.max(jnp.abs(out - ref)))
    assert err < 1e-3, err                                           # tightened from 1e-2
    print("KERNEL_OK")
</pallas_src>

<mosaic_0001>
module attributes {stable_mosaic.version = 11 : i64} {
  func.func @kernel(%arg0: i32, %arg1: memref<64x256xf32, #tpu.memory_space<vmem>>, %arg2: memref<256x64xf32, #tpu.memory_space<vmem>>, %arg3: memref<64x64xf32, #tpu.memory_space<vmem>>, %arg4: memref<64x256xf32, #tpu.memory_space<vmem>>, %arg5: memref<64x64xf32, #tpu.memory_space<vmem>>, %arg6: memref<64x2xf32, #tpu.memory_space<vmem>>, %arg7: memref<64x256xf32, #tpu.memory_space<vmem>>) attributes {dimension_semantics = [#tpu.dimension_semantics<arbitrary>], iteration_bounds = array<i64: 1>, scalar_prefetch = 0 : i64, scratch_operands = 0 : i64, tpu.core_type = #tpu.core_type<tc>, window_params = [{pipeline_mode = #tpu.pipeline_mode<synchronous>, transform_indices = @transform_0, window_bounds = array<i64: 64, 256>}, {pipeline_mode = #tpu.pipeline_mode<synchronous>, transform_indices = @transform_1, window_bounds = array<i64: 256, 64>}, {pipeline_mode = #tpu.pipeline_mode<synchronous>, transform_indices = @transform_2, window_bounds = array<i64: 64, 64>}, {pipeline_mode = #tpu.pipeline_mode<synchronous>, transform_indices = @transform_3, window_bounds = array<i64: 64, 256>}, {pipeline_mode = #tpu.pipeline_mode<synchronous>, transform_indices = @transform_4, window_bounds = array<i64: 64, 64>}, {pipeline_mode = #tpu.pipeline_mode<synchronous>, transform_indices = @transform_5, window_bounds = array<i64: 64, 2>}, {pipeline_mode = #tpu.pipeline_mode<synchronous>, transform_indices = @transform_6, window_bounds = array<i64: 64, 256>}]} {
    %c0 = arith.constant 0 : index
    %c0_0 = arith.constant 0 : index
    %0 = vector.load %arg1[%c0, %c0_0] : memref<64x256xf32, #tpu.memory_space<vmem>>, vector<64x256xf32>
    %c0_1 = arith.constant 0 : index
    %c0_2 = arith.constant 0 : index
    %1 = vector.load %arg2[%c0_1, %c0_2] : memref<256x64xf32, #tpu.memory_space<vmem>>, vector<256x64xf32>
    %cst = arith.constant dense<0.000000e+00> : vector<64x64xf32>
    %2 = tpu.matmul %0, %1, %cst {dimension_numbers = #tpu.dot_dimension_numbers<[1], [0], [0], [1], [0, 0, 1, 1], [], []>} : vector<64x256xf32>, vector<256x64xf32>, vector<64x64xf32> -> vector<64x64xf32>
    %c0_3 = arith.constant 0 : index
    %c0_4 = arith.constant 0 : index
    %3 = vector.load %arg3[%c0_3, %c0_4] : memref<64x64xf32, #tpu.memory_space<vmem>>, vector<64x64xf32>
    %cst_5 = arith.constant dense<0.000000e+00> : vector<64x64xf32>
    %4 = tpu.matmul %3, %2, %cst_5 {dimension_numbers = #tpu.dot_dimension_numbers<[1], [0], [0], [1], [0, 0, 1, 1], [], []>} : vector<64x64xf32>, vector<64x64xf32>, vector<64x64xf32> -> vector<64x64xf32>
    %cst_6 = arith.constant dense<0.000000e+00> : vector<64xf32>
    %5 = vector.multi_reduction <add>, %4, %cst_6 [1] : vector<64x64xf32> to vector<64xf32>
    %6 = vector.shape_cast %5 : vector<64xf32> to vector<64x1xf32>
    %c0_7 = arith.constant 0 : index
    %c0_8 = arith.constant 0 : index
    %7 = vector.load %arg5[%c0_7, %c0_8] : memref<64x64xf32, #tpu.memory_space<vmem>>, vector<64x64xf32>
    %cst_9 = arith.constant dense<0.000000e+00> : vector<64x1xf32>
    %8 = tpu.matmul %7, %6, %cst_9 {dimension_numbers = #tpu.dot_dimension_numbers<[1], [0], [0], [1], [0, 0, 1, 1], [], []>} : vector<64x64xf32>, vector<64x1xf32>, vector<64x1xf32> -> vector<64x1xf32>
    %cst_10 = arith.constant 9.765625E-4 : f32
    %9 = vector.broadcast %cst_10 : f32 to vector<64x1xf32>
    %10 = arith.mulf %8, %9 : vector<64x1xf32>
    %11 = vector.broadcast %10 : vector<64x1xf32> to vector<64x64xf32>
    %12 = arith.subf %4, %11 : vector<64x64xf32>
    %13 = arith.mulf %12, %12 : vector<64x64xf32>
    %cst_11 = arith.constant dense<0.000000e+00> : vector<64xf32>
    %14 = vector.multi_reduction <add>, %13, %cst_11 [1] : vector<64x64xf32> to vector<64xf32>
    %15 = vector.shape_cast %14 : vector<64xf32> to vector<64x1xf32>
    %c0_12 = arith.constant 0 : index
    %c0_13 = arith.constant 0 : index
    %16 = vector.load %arg5[%c0_12, %c0_13] : memref<64x64xf32, #tpu.memory_space<vmem>>, vector<64x64xf32>
    %cst_14 = arith.constant dense<0.000000e+00> : vector<64x1xf32>
    %17 = tpu.matmul %16, %15, %cst_14 {dimension_numbers = #tpu.dot_dimension_numbers<[1], [0], [0], [1], [0, 0, 1, 1], [], []>} : vector<64x64xf32>, vector<64x1xf32>, vector<64x1xf32> -> vector<64x1xf32>
    %cst_15 = arith.constant 9.765625E-4 : f32
    %18 = vector.broadcast %cst_15 : f32 to vector<64x1xf32>
    %19 = arith.mulf %17, %18 : vector<64x1xf32>
    %c0_16 = arith.constant 0 : index
    %c0_17 = arith.constant 0 : index
    %20 = vector.load %arg6[%c0_16, %c0_17] : memref<64x2xf32, #tpu.memory_space<vmem>>, vector<64x1xf32>
    %cst_18 = arith.constant 9.99999974E-6 : f32
    %21 = vector.broadcast %cst_18 : f32 to vector<64x1xf32>
    %22 = arith.addf %19, %21 : vector<64x1xf32>
    %23 = math.rsqrt %22 : vector<64x1xf32>
    %24 = arith.mulf %20, %23 : vector<64x1xf32>
    %c0_19 = arith.constant 0 : index
    %c1 = arith.constant 1 : index
    %25 = vector.load %arg6[%c0_19, %c1] : memref<64x2xf32, #tpu.memory_space<vmem>>, vector<64x1xf32>
    %26 = arith.mulf %10, %24 : vector<64x1xf32>
    %27 = arith.subf %25, %26 : vector<64x1xf32>
    %28 = vector.broadcast %24 : vector<64x1xf32> to vector<64x64xf32>
    %29 = arith.mulf %4, %28 : vector<64x64xf32>
    %30 = vector.broadcast %27 : vector<64x1xf32> to vector<64x64xf32>
    %31 = arith.addf %29, %30 : vector<64x64xf32>
    %cst_20 = arith.constant 0.000000e+00 : f32
    %32 = vector.broadcast %cst_20 : f32 to vector<64x64xf32>
    %33 = arith.subf %32, %31 : vector<64x64xf32>
    %34 = math.exp %33 : vector<64x64xf32>
    %cst_21 = arith.constant 1.000000e+00 : f32
    %35 = vector.broadcast %cst_21 : f32 to vector<64x64xf32>
    %36 = arith.addf %35, %34 : vector<64x64xf32>
    %cst_22 = arith.constant 1.000000e+00 : f32
    %37 = vector.broadcast %cst_22 : f32 to vector<64x64xf32>
    %38 = arith.divf %37, %36 : vector<64x64xf32>
    %c0_23 = arith.constant 0 : index
    %c0_24 = arith.constant 0 : index
    %39 = vector.load %arg4[%c0_23, %c0_24] : memref<64x256xf32, #tpu.memory_space<vmem>>, vector<64x256xf32>
    %cst_25 = arith.constant dense<0.000000e+00> : vector<64x256xf32>
    %40 = tpu.matmul %38, %39, %cst_25 {dimension_numbers = #tpu.dot_dimension_numbers<[1], [0], [0], [1], [0, 0, 1, 1], [], []>} : vector<64x64xf32>, vector<64x256xf32>, vector<64x256xf32> -> vector<64x256xf32>
    %c0_26 = arith.constant 0 : index
    %c0_27 = arith.constant 0 : index
    %41 = vector.load %arg7[%c0_26, %c0_27] : memref<64x256xf32, #tpu.memory_space<vmem>>, vector<64x256xf32>
    tpu.vector_store %arg7[%c0_26, %c0_27], %40 {strides = array<i32>} : memref<64x256xf32, #tpu.memory_space<vmem>>, vector<64x256xf32>,
    return
  }
  func.func @transform_0(%arg0: i32) -> (i32, i32) {
    %c0_i32 = arith.constant 0 : i32
    %c0_i32_0 = arith.constant 0 : i32
    %c0_i32_1 = arith.constant 0 : i32
    return %c0_i32, %c0_i32_0 : i32, i32
  }
  func.func @transform_1(%arg0: i32) -> (i32, i32) {
    %c0_i32 = arith.constant 0 : i32
    %c0_i32_0 = arith.constant 0 : i32
    %c0_i32_1 = arith.constant 0 : i32
    return %c0_i32, %c0_i32_0 : i32, i32
  }
  func.func @transform_2(%arg0: i32) -> (i32, i32) {
    %c0_i32 = arith.constant 0 : i32
    %c0_i32_0 = arith.constant 0 : i32
    %c0_i32_1 = arith.constant 0 : i32
    return %c0_i32, %c0_i32_0 : i32, i32
  }
  func.func @transform_3(%arg0: i32) -> (i32, i32) {
    %c0_i32 = arith.constant 0 : i32
    %c0_i32_0 = arith.constant 0 : i32
    %c0_i32_1 = arith.constant 0 : i32
    return %c0_i32, %c0_i32_0 : i32, i32
  }
  func.func @transform_4(%arg0: i32) -> (i32, i32) {
    %c0_i32 = arith.constant 0 : i32
    %c0_i32_0 = arith.constant 0 : i32
    %c0_i32_1 = arith.constant 0 : i32
    return %c0_i32, %c0_i32_0 : i32, i32
  }
  func.func @transform_5(%arg0: i32) -> (i32, i32) {
    %c0_i32 = arith.constant 0 : i32
    %c0_i32_0 = arith.constant 0 : i32
    %c0_i32_1 = arith.constant 0 : i32
    return %c0_i32, %c0_i32_0 : i32, i32
  }
  func.func @transform_6(%arg0: i32) -> (i32, i32) {
    %c0_i32 = arith.constant 0 : i32
    %c0_i32_0 = arith.constant 0 : i32
    %c0_i32_1 = arith.constant 0 : i32
    return %c0_i32, %c0_i32_0 : i32, i32
  }
}

</mosaic_0001>

<llo_original>
// kernel: tile.10
$region0: #{tile.10}
  #allocation0 [shape = 's32[1]{0}', space=sflag, size = 0x4, scoped, tag = 'scoped memory for tile.10']
  %s0 = inlined_call_operand.vmem [shape: f32[32], index: 0, kind: input, shape index: {}]
  %s1 = inlined_call_operand.vmem [shape: f32[2,32], index: 1, kind: output, shape index: {}]
  // Predicated region
  $region2: #{tile.10} parent=0 // pred_check
    _
  $region3: #{tile.10} parent=0 // pred_check_branch
    %3 = sbr.rel (0) target = $region5
  $region4: #{tile.10} parent=0 // pred_region
    _
  $region5: #{tile.10} parent=0 // pred_fallthru
    _
  %v4 = vld [vmem:[%s0] ss:$0 sm:$0xff]
  %5 = vst [vmem:[%s1] sm:$0x3] %v4

// kernel: tile.9
$region0: #{tile.9}
  %s0 = inlined_call_operand.vmem [shape: f32[4,8], index: 0, kind: input, shape index: {}]
  %s1 = inlined_call_operand.vmem [shape: f32[32], index: 1, kind: output, shape index: {}]
  $region1: #{tile.9} parent=0
    #allocation0 [shape = 'u8[4096]{0}', space=vmem, size = 0x1000, scoped, tag = 'scoped mem for output reshape']
    #allocation1 [shape = 'u8[4096]{0}', space=vmem, size = 0x1000, scoped, tag = 'scoped mem for input reshape']
    %s3 = sshllo.u32 0, 4
    %v4 = vld [vmem:[%s0] sm:%s3]
    %5 = vst [vmem:[#allocation1] sm:%s3] %v4
    %v6 = vld [vmem:[#allocation1] sm:$0x1]
    %vm7 = vcmask 64512
    %8 = vst.msk [vmem:[#allocation0] sm:$0x1] %vm7, %v6
    %s9 = scalar_lea.vmem [#allocation1], 3
    %v10 = vld [vmem:[%s9] sm:$0x1]
    %11 = vrot.lane.b32.xlu0 %v10, 24
    %v12 = vpop.permute.xlu0 %11
    %vm13 = vcmask 261312
    %14 = vst.msk [vmem:[#allocation0] sm:$0x1] %vm13, %v12
    %s15 = scalar_lea.vmem [#allocation1], 2
    %v16 = vld [vmem:[%s15] sm:$0x1]
    %17 = vrot.lane.b32.xlu0 %v16, 16
    %v18 = vpop.permute.xlu0 %17
    %vm19 = vcmask 195712
    %20 = vst.msk [vmem:[#allocation0] sm:$0x1] %vm19, %v18
    %s21 = scalar_lea.vmem [#allocation1], 1
    %v22 = vld [vmem:[%s21] sm:$0x1]
    %23 = vrot.lane.b32.xlu0 %v22, 8
    %v24 = vpop.permute.xlu0 %23
    %vm25 = vcmask 130112
    %26 = vst.msk [vmem:[#allocation0] sm:$0x1] %vm25, %v24
    %s28 = sshllo.u32 0, 1
    %v30 = vld [vmem:[#allocation0] sm:%s28]
    %s31 = sshllo.u32 0, 1
    %32 = vst [vmem:[%s1] sm:%s31] %v30

// kernel: tile.14
$region0: #{tile.14}
  %s0 = inlined_call_operand.vmem [shape: f32[2,32], index: 0, kind: input, shape index: {}]
  %s1 = inlined_call_operand.vmem [shape: f32[64,1], index: 1, kind: output, shape index: {}]
  $region1: #{tile.14} parent=0
    #allocation0 [shape = 'u8[4096]{0}', space=vmem, size = 0x1000, scoped, tag = 'scoped mem for output reshape']
    #allocation1 [shape = 'u8[4096]{0}', space=vmem, size = 0x1000, scoped, tag = 'scoped mem for input reshape']
    %s3 = sshllo.u32 0, 2
    %v4 = vld [vmem:[%s0] sm:%s3]
    %5 = vst [vmem:[#allocation1] sm:%s3] %v4
    %v6 = vld [vmem:[#allocation1] sm:$0x1]
    %vm7 = vcmask 261120
    %8 = vst.msk [vmem:[#allocation0] sm:$0x1] %vm7, %v6
    %s9 = scalar_lea.vmem [#allocation1], 1
    %v10 = vld [vmem:[%s9] sm:$0x1]
    %11 = vrot.lane.b32.xlu0 %v10, 32
    %v12 = vpop.permute.xlu0 %11
    %vm13 = vcmask 523520
    %14 = vst.msk [vmem:[#allocation0] sm:$0x1] %vm13, %v12
    %s16 = sshllo.u32 0, 1
    %v18 = vld [vmem:[#allocation0] sm:%s16]
    %s19 = sshllo.u32 0, 1
    %20 = vst [vmem:[%s1] sm:%s19] %v18

// kernel: mul.4
$region0: #{mul.4}
  %s0 = inlined_call_operand.vmem [shape: f32[4,8,4,8], index: 0, kind: input, shape index: {}]
  %s1 = inlined_call_operand.vmem [shape: f32[32,32], index: 1, kind: output, shape index: {}]
  $region1: #{mul.4} parent=0
    #allocation0 [shape = 'u8[131072]{0}', space=vmem, size = 0x20000, scoped, tag = 'scoped mem for input reshape']
    %s3 = sshllo.u32 0, 4
    %s4 = smul.addr 4, 31
    %s5 = scalar_lea.vmem %s0, %s4
    %v6 = vld [vmem:[%s5] sm:%s3]
    %s7 = scalar_lea.vmem [#allocation0], 248
    %8 = vst [vmem:[%s7] sm:%s3] %v6
    %s9 = smul.addr 4, 30
    %s10 = scalar_lea.vmem %s0, %s9
    %v11 = vld [vmem:[%s10] sm:%s3]
    %s12 = scalar_lea.vmem [#allocation0], 240
    %13 = vst [vmem:[%s12] sm:%s3] %v11
    %s14 = smul.addr 4, 29
    %s15 = scalar_lea.vmem %s0, %s14
    %v16 = vld [vmem:[%s15] sm:%s3]
    %s17 = scalar_lea.vmem [#allocation0], 232
    %18 = vst [vmem:[%s17] sm:%s3] %v16
    %s19 = smul.addr 4, 28
    %s20 = scalar_lea.vmem %s0, %s19
    %v21 = vld [vmem:[%s20] sm:%s3]
    %s22 = scalar_lea.vmem [#allocation0], 224
    %23 = vst [vmem:[%s22] sm:%s3] %v21
    %s24 = smul.addr 4, 27
    %s25 = scalar_lea.vmem %s0, %s24
    %v26 = vld [vmem:[%s25] sm:%s3]
    %s27 = scalar_lea.vmem [#allocation0], 216
    %28 = vst [vmem:[%s27] sm:%s3] %v26
    %s29 = smul.addr 4, 26
    %s30 = scalar_lea.vmem %s0, %s29
    %v31 = vld [vmem:[%s30] sm:%s3]
    %s32 = scalar_lea.vmem [#allocation0], 208
    %33 = vst [vmem:[%s32] sm:%s3] %v31
    %s34 = smul.addr 4, 25
    %s35 = scalar_lea.vmem %s0, %s34
    %v36 = vld [vmem:[%s35] sm:%s3]
    %s37 = scalar_lea.vmem [#allocation0], 200
    %38 = vst [vmem:[%s37] sm:%s3] %v36
    %s39 = smul.addr 4, 24
    %s40 = scalar_lea.vmem %s0, %s39
    %v41 = vld [vmem:[%s40] sm:%s3]
    %s42 = scalar_lea.vmem [#allocation0], 192
    %43 = vst [vmem:[%s42] sm:%s3] %v41
    %s44 = smul.addr 4, 23
    %s45 = scalar_lea.vmem %s0, %s44
    %v46 = vld [vmem:[%s45] sm:%s3]
    %s47 = scalar_lea.vmem [#allocation0], 184
    %48 = vst [vmem:[%s47] sm:%s3] %v46
    %s49 = smul.addr 4, 22
    %s50 = scalar_lea.vmem %s0, %s49
    %v51 = vld [vmem:[%s50] sm:%s3]
    %s52 = scalar_lea.vmem [#allocation0], 176
    %53 = vst [vmem:[%s52] sm:%s3] %v51
    %s54 = smul.addr 4, 21
    %s55 = scalar_lea.vmem %s0, %s54
    %v56 = vld [vmem:[%s55] sm:%s3]
    %s57 = scalar_lea.vmem [#allocation0], 168
    %58 = vst [vmem:[%s57] sm:%s3] %v56
    %s59 = smul.addr 4, 20
    %s60 = scalar_lea.vmem %s0, %s59
    %v61 = vld [vmem:[%s60] sm:%s3]
    %s62 = scalar_lea.vmem [#allocation0], 160
    %63 = vst [vmem:[%s62] sm:%s3] %v61
    %s64 = smul.addr 4, 19
    %s65 = scalar_lea.vmem %s0, %s64
    %v66 = vld [vmem:[%s65] sm:%s3]
    %s67 = scalar_lea.vmem [#allocation0], 152
    %68 = vst [vmem:[%s67] sm:%s3] %v66
    %s69 = smul.addr 4, 18
    %s70 = scalar_lea.vmem %s0, %s69
    %v71 = vld [vmem:[%s70] sm:%s3]
    %s72 = scalar_lea.vmem [#allocation0], 144
    %73 = vst [vmem:[%s72] sm:%s3] %v71
    %s74 = smul.addr 4, 17
    %s75 = scalar_lea.vmem %s0, %s74
    %v76 = vld [vmem:[%s75] sm:%s3]
    %s77 = scalar_lea.vmem [#allocation0], 136
    %78 = vst [vmem:[%s77] sm:%s3] %v76
    %s79 = smul.addr 4, 16
    %s80 = scalar_lea.vmem %s0, %s79
    %v81 = vld [vmem:[%s80] sm:%s3]
    %s82 = scalar_lea.vmem [#allocation0], 128
    %83 = vst [vmem:[%s82] sm:%s3] %v81
    %s84 = smul.addr 4, 15
    %s85 = scalar_lea.vmem %s0, %s84
    %v86 = vld [vmem:[%s85] sm:%s3]
    %s87 = scalar_lea.vmem [#allocation0], 120
    %88 = vst [vmem:[%s87] sm:%s3] %v86
    %s89 = smul.addr 4, 14
    %s90 = scalar_lea.vmem %s0, %s89
    %v91 = vld [vmem:[%s90] sm:%s3]
    %s92 = scalar_lea.vmem [#allocation0], 112
    %93 = vst [vmem:[%s92] sm:%s3] %v91
    %s94 = smul.addr 4, 13
    %s95 = scalar_lea.vmem %s0, %s94
    %v96 = vld [vmem:[%s95] sm:%s3]
    %s97 = scalar_lea.vmem [#allocation0], 104
    %98 = vst [vmem:[%s97] sm:%s3] %v96
    %s99 = smul.addr 4, 12
    %s100 = scalar_lea.vmem %s0, %s99
    %v101 = vld [vmem:[%s100] sm:%s3]
    %s102 = scalar_lea.vmem [#allocation0], 96
    %103 = vst [vmem:[%s102] sm:%s3] %v101
    %s104 = smul.addr 4, 11
    %s105 = scalar_lea.vmem %s0, %s104
    %v106 = vld [vmem:[%s105] sm:%s3]
    %s107 = scalar_lea.vmem [#allocation0], 88
    %108 = vst [vmem:[%s107] sm:%s3] %v106
    %s109 = smul.addr 4, 10
    %s110 = scalar_lea.vmem %s0, %s109
    %v111 = vld [vmem:[%s110] sm:%s3]
    %s112 = scalar_lea.vmem [#allocation0], 80
    %113 = vst [vmem:[%s112] sm:%s3] %v111
    %s114 = smul.addr 4, 9
    %s115 = scalar_lea.vmem %s0, %s114
    %v116 = vld [vmem:[%s115] sm:%s3]
    %s117 = scalar_lea.vmem [#allocation0], 72
    %118 = vst [vmem:[%s117] sm:%s3] %v116
    %s119 = smul.addr 4, 8
    %s120 = scalar_lea.vmem %s0, %s119
    %v121 = vld [vmem:[%s120] sm:%s3]
    %s122 = scalar_lea.vmem [#allocation0], 64
    %123 = vst [vmem:[%s122] sm:%s3] %v121
    %s124 = smul.addr 4, 7
    %s125 = scalar_lea.vmem %s0, %s124
    %v126 = vld [vmem:[%s125] sm:%s3]
    %s127 = scalar_lea.vmem [#allocation0], 56
    %128 = vst [vmem:[%s127] sm:%s3] %v126
    %s129 = smul.addr 4, 6
    %s130 = scalar_lea.vmem %s0, %s129
    %v131 = vld [vmem:[%s130] sm:%s3]
    %s132 = scalar_lea.vmem [#allocation0], 48
    %133 = vst [vmem:[%s132] sm:%s3] %v131
    %s134 = smul.addr 4, 5
    %s135 = scalar_lea.vmem %s0, %s134
    %v136 = vld [vmem:[%s135] sm:%s3]
    %s137 = scalar_lea.vmem [#allocation0], 40
    %138 = vst [vmem:[%s137] sm:%s3] %v136
    %s139 = smul.addr 4, 4
    %s140 = scalar_lea.vmem %s0, %s139
    %v141 = vld [vmem:[%s140] sm:%s3]
    %s142 = scalar_lea.vmem [#allocation0], 32
    %143 = vst [vmem:[%s142] sm:%s3] %v141
    %s144 = smul.addr 4, 3
    %s145 = scalar_lea.vmem %s0, %s144
    %v146 = vld [vmem:[%s145] sm:%s3]
    %s147 = scalar_lea.vmem [#allocation0], 24
    %148 = vst [vmem:[%s147] sm:%s3] %v146
    %s149 = smul.addr 4, 2
    %s150 = scalar_lea.vmem %s0, %s149
    %v151 = vld [vmem:[%s150] sm:%s3]
    %s152 = scalar_lea.vmem [#allocation0], 16
    %153 = vst [vmem:[%s152] sm:%s3] %v151
    %s154 = scalar_lea.vmem %s0, 4
    %v155 = vld [vmem:[%s154] sm:%s3]
    %s156 = scalar_lea.vmem [#allocation0], 8
    %157 = vst [vmem:[%s156] sm:%s3] %v155
    %v158 = vld [vmem:[%s0] sm:%s3]
    %159 = vst [vmem:[#allocation0] sm:%s3] %v158
    %v160 = vld [vmem:[#allocation0] ss:$8 sm:$0xf]
    %v161 = vld [vmem:[#allocation0] ss:$8 sm:$0xf0]
    %vm162 = vcmask 1047556
    %v163 = vsel %vm162, %v161, %v160
    %vm164 = vcmask 64512
    %165 = vst.msk [vmem:[%s1] sm:$0xff] %vm164, %v163
    %s166 = scalar_lea.vmem [#allocation0], 64
    %v167 = vld [vmem:[%s166] ss:$8 sm:$0xf]
    %s168 = scalar_lea.vmem [#allocation0], 64
    %v169 = vld [vmem:[%s168] ss:$8 sm:$0xf0]
    %vm170 = vcmask 1047556
    %v171 = vsel %vm170, %v169, %v167
    %vm172 = vcmask 64512
    %s173 = scalar_lea.vmem %s1, 8
    %174 = vst.msk [vmem:[%s173] sm:$0xff] %vm172, %v171
    %s175 = scalar_lea.vmem [#allocation0], 128
    %v176 = vld [vmem:[%s175] ss:$8 sm:$0xf]
    %s177 = scalar_lea.vmem [#allocation0], 128
    %v178 = vld [vmem:[%s177] ss:$8 sm:$0xf0]
    %vm179 = vcmask 1047556
    %v180 = vsel %vm179, %v178, %v176
    %vm181 = vcmask 64512
    %s182 = scalar_lea.vmem %s1, 16
    %183 = vst.msk [vmem:[%s182] sm:$0xff] %vm181, %v180
    %s184 = scalar_lea.vmem [#allocation0], 192
    %v185 = vld [vmem:[%s184] ss:$8 sm:$0xf]
    %s186 = scalar_lea.vmem [#allocation0], 192
    %v187 = vld [vmem:[%s186] ss:$8 sm:$0xf0]
    %vm188 = vcmask 1047556
    %v189 = vsel %vm188, %v187, %v185
    %vm190 = vcmask 64512
    %s191 = scalar_lea.vmem %s1, 24
    %192 = vst.msk [vmem:[%s191] sm:$0xff] %vm190, %v189
    %s193 = scalar_lea.vmem [#allocation0], 3
    %v194 = vld [vmem:[%s193] ss:$8 sm:$0xf]
    %s195 = scalar_lea.vmem [#allocation0], 3
    %v196 = vld [vmem:[%s195] ss:$8 sm:$0xf0]
    %vm197 = vcmask 1047556
    %v198 = vsel %vm197, %v196, %v194
    %199 = vrot.lane.b32.xlu0 %v198, 24
    %v200 = vpop.permute.xlu0 %199
    %vm201 = vcmask 261312
    %202 = vst.msk [vmem:[%s1] sm:$0xff] %vm201, %v200
    %s203 = scalar_lea.vmem [#allocation0], 67
    %v204 = vld [vmem:[%s203] ss:$8 sm:$0xf]
    %s205 = scalar_lea.vmem [#allocation0], 67
    %v206 = vld [vmem:[%s205] ss:$8 sm:$0xf0]
    %vm207 = vcmask 1047556
    %v208 = vsel %vm207, %v206, %v204
    %209 = vrot.lane.b32.xlu0 %v208, 24
    %v210 = vpop.permute.xlu0 %209
    %vm211 = vcmask 261312
    %s212 = scalar_lea.vmem %s1, 8
    %213 = vst.msk [vmem:[%s212] sm:$0xff] %vm211, %v210
    %s214 = scalar_lea.vmem [#allocation0], 131
    %v215 = vld [vmem:[%s214] ss:$8 sm:$0xf]
    %s216 = scalar_lea.vmem [#allocation0], 131
    %v217 = vld [vmem:[%s216] ss:$8 sm:$0xf0]
    %vm218 = vcmask 1047556
    %v219 = vsel %vm218, %v217, %v215
    %220 = vrot.lane.b32.xlu0 %v219, 24
    %v221 = vpop.permute.xlu0 %220
    %vm222 = vcmask 261312
    %s223 = scalar_lea.vmem %s1, 16
    %224 = vst.msk [vmem:[%s223] sm:$0xff] %vm222, %v221
    %s225 = scalar_lea.vmem [#allocation0], 195
    %v226 = vld [vmem:[%s225] ss:$8 sm:$0xf]
    %s227 = scalar_lea.vmem [#allocation0], 195
    %v228 = vld [vmem:[%s227] ss:$8 sm:$0xf0]
    %vm229 = vcmask 1047556
    %v230 = vsel %vm229, %v228, %v226
    %231 = vrot.lane.b32.xlu0 %v230, 24
    %v232 = vpop.permute.xlu0 %231
    %vm233 = vcmask 261312
    %s234 = scalar_lea.vmem %s1, 24
    %235 = vst.msk [vmem:[%s234] sm:$0xff] %vm233, %v232
    %s236 = scalar_lea.vmem [#allocation0], 2
    %v237 = vld [vmem:[%s236] ss:$8 sm:$0xf]
    %s238 = scalar_lea.vmem [#allocation0], 2
    %v239 = vld [vmem:[%s238] ss:$8 sm:$0xf0]
    %vm240 = vcmask 1047556
    %v241 = vsel %vm240, %v239, %v237
    %242 = vrot.lane.b32.xlu0 %v241, 16
    %v243 = vpop.permute.xlu0 %242
    %vm244 = vcmask 195712
    %245 = vst.msk [vmem:[%s1] sm:$0xff] %vm244, %v243
    %s246 = scalar_lea.vmem [#allocation0], 66
    %v247 = vld [vmem:[%s246] ss:$8 sm:$0xf]
    %s248 = scalar_lea.vmem [#allocation0], 66
    %v249 = vld [vmem:[%s248] ss:$8 sm:$0xf0]
    %vm250 = vcmask 1047556
    %v251 = vsel %vm250, %v249, %v247
    %252 = vrot.lane.b32.xlu0 %v251, 16
    %v253 = vpop.permute.xlu0 %252
    %vm254 = vcmask 195712
    %s255 = scalar_lea.vmem %s1, 8
    %256 = vst.msk [vmem:[%s255] sm:$0xff] %vm254, %v253
    %s257 = scalar_lea.vmem [#allocation0], 130
    %v258 = vld [vmem:[%s257] ss:$8 sm:$0xf]
    %s259 = scalar_lea.vmem [#allocation0], 130
    %v260 = vld [vmem:[%s259] ss:$8 sm:$0xf0]
    %vm261 = vcmask 1047556
    %v262 = vsel %vm261, %v260, %v258
    %263 = vrot.lane.b32.xlu0 %v262, 16
    %v264 = vpop.permute.xlu0 %263
    %vm265 = vcmask 195712
    %s266 = scalar_lea.vmem %s1, 16
    %267 = vst.msk [vmem:[%s266] sm:$0xff] %vm265, %v264
    %s268 = scalar_lea.vmem [#allocation0], 194
    %v269 = vld [vmem:[%s268] ss:$8 sm:$0xf]
    %s270 = scalar_lea.vmem [#allocation0], 194
    %v271 = vld [vmem:[%s270] ss:$8 sm:$0xf0]
    %vm272 = vcmask 1047556
    %v273 = vsel %vm272, %v271, %v269
    %274 = vrot.lane.b32.xlu0 %v273, 16
    %v275 = vpop.permute.xlu0 %274
    %vm276 = vcmask 195712
    %s277 = scalar_lea.vmem %s1, 24
    %278 = vst.msk [vmem:[%s277] sm:$0xff] %vm276, %v275
    %s279 = scalar_lea.vmem [#allocation0], 1
    %v280 = vld [vmem:[%s279] ss:$8 sm:$0xf]
    %s281 = scalar_lea.vmem [#allocation0], 1
    %v282 = vld [vmem:[%s281] ss:$8 sm:$0xf0]
    %vm283 = vcmask 1047556
    %v284 = vsel %vm283, %v282, %v280
    %285 = vrot.lane.b32.xlu0 %v284, 8
    %v286 = vpop.permute.xlu0 %285
    %vm287 = vcmask 130112
    %288 = vst.msk [vmem:[%s1] sm:$0xff] %vm287, %v286
    %s289 = scalar_lea.vmem [#allocation0], 65
    %v290 = vld [vmem:[%s289] ss:$8 sm:$0xf]
    %s291 = scalar_lea.vmem [#allocation0], 65
    %v292 = vld [vmem:[%s291] ss:$8 sm:$0xf0]
    %vm293 = vcmask 1047556
    %v294 = vsel %vm293, %v292, %v290
    %295 = vrot.lane.b32.xlu0 %v294, 8
    %v296 = vpop.permute.xlu0 %295
    %vm297 = vcmask 130112
    %s298 = scalar_lea.vmem %s1, 8
    %299 = vst.msk [vmem:[%s298] sm:$0xff] %vm297, %v296
    %s300 = scalar_lea.vmem [#allocation0], 129
    %v301 = vld [vmem:[%s300] ss:$8 sm:$0xf]
    %s302 = scalar_lea.vmem [#allocation0], 129
    %v303 = vld [vmem:[%s302] ss:$8 sm:$0xf0]
    %vm304 = vcmask 1047556
    %v305 = vsel %vm304, %v303, %v301
    %306 = vrot.lane.b32.xlu0 %v305, 8
    %v307 = vpop.permute.xlu0 %306
    %vm308 = vcmask 130112
    %s309 = scalar_lea.vmem %s1, 16
    %310 = vst.msk [vmem:[%s309] sm:$0xff] %vm308, %v307
    %s311 = scalar_lea.vmem [#allocation0], 193
    %v312 = vld [vmem:[%s311] ss:$8 sm:$0xf]
    %s313 = scalar_lea.vmem [#allocation0], 193
    %v314 = vld [vmem:[%s313] ss:$8 sm:$0xf0]
    %vm315 = vcmask 1047556
    %v316 = vsel %vm315, %v314, %v312
    %317 = vrot.lane.b32.xlu0 %v316, 8
    %v318 = vpop.permute.xlu0 %317
    %vm319 = vcmask 130112
    %s320 = scalar_lea.vmem %s1, 24
    %321 = vst.msk [vmem:[%s320] sm:$0xff] %vm319, %v318

// kernel: s122_forward.1
$region0: #{s122_forward.1}
  #allocation0 [shape = 'u32[]', space=smem, size = 0x4, offset = 0x4, fixed_abs, tag = 'smem constant byte address 0x4 - core index']
  #allocation1 [shape = 'u32[144,128]{1,0:T(1,128)}', space=vmem, size = 0x12000, scoped, tag = 'internal scratch']
  %s0 = inlined_call_operand.vmem [shape: f32[64,256], index: 0, kind: input, shape index: {}]
  %s1 = inlined_call_operand.vmem [shape: f32[256,64], index: 1, kind: input, shape index: {}]
  %s2 = inlined_call_operand.vmem [shape: f32[64,64], index: 2, kind: input, shape index: {}]
  %s3 = inlined_call_operand.vmem [shape: f32[64,256], index: 3, kind: input, shape index: {}]
  %s4 = inlined_call_operand.vmem [shape: f32[64,64], index: 4, kind: input, shape index: {}]
  %s5 = inlined_call_operand.vmem [shape: f32[64,2], index: 5, kind: input, shape index: {}]
  %s6 = inlined_call_operand.vmem [shape: f32[64,256], index: 6, kind: output, shape index: {}]
  %s7 = sld [smem:[#allocation0]]
  $region34: #{s122_forward.1} parent=0
    _
  %s9 = ssub.s32 1, %s7
  %s10 = scalar_select 0, %s9, %s7
  // Predicated region
  $region2: #{s122_forward.1} parent=0 // pred_check
    _
  $region3: #{s122_forward.1} parent=0 // pred_check_branch
    %12 = sbr.rel (0) target = $region5
  $region4: #{s122_forward.1} parent=0 // pred_region
    _
  $region5: #{s122_forward.1} parent=0 // pred_fallthru
    _
  // Predicated region
  $region6: #{s122_forward.1} parent=0 // pred_check
    _
  $region7: #{s122_forward.1} parent=0 // pred_check_branch
    %14 = sbr.rel (0) target = $region9
  $region8: #{s122_forward.1} parent=0 // pred_region
    _
  $region9: #{s122_forward.1} parent=0 // pred_fallthru
    _
  // Predicated region
  $region10: #{s122_forward.1} parent=0 // pred_check
    _
  $region11: #{s122_forward.1} parent=0 // pred_check_branch
    %16 = sbr.rel (0) target = $region13
  $region12: #{s122_forward.1} parent=0 // pred_region
    _
  $region13: #{s122_forward.1} parent=0 // pred_fallthru
    _
  // Predicated region
  $region14: #{s122_forward.1} parent=0 // pred_check
    _
  $region15: #{s122_forward.1} parent=0 // pred_check_branch
    %18 = sbr.rel (0) target = $region17
  $region16: #{s122_forward.1} parent=0 // pred_region
    _
  $region17: #{s122_forward.1} parent=0 // pred_fallthru
    _
  // Predicated region
  $region18: #{s122_forward.1} parent=0 // pred_check
    _
  $region19: #{s122_forward.1} parent=0 // pred_check_branch
    %20 = sbr.rel (0) target = $region21
  $region20: #{s122_forward.1} parent=0 // pred_region
    _
  $region21: #{s122_forward.1} parent=0 // pred_fallthru
    _
  // Predicated region
  $region22: #{s122_forward.1} parent=0 // pred_check
    _
  $region23: #{s122_forward.1} parent=0 // pred_check_branch
    %22 = sbr.rel (0) target = $region25
  $region24: #{s122_forward.1} parent=0 // pred_region
    _
  $region25: #{s122_forward.1} parent=0 // pred_fallthru
    _
  %v23 = vld [vmem:[%s0] sm:$0xff]
  %v24 = vld [vmem:[%s0 + $0x8] sm:$0xff]
  %v25 = vld [vmem:[%s0 + $0x10] sm:$0xff]
  %v26 = vld [vmem:[%s0 + $0x18] sm:$0xff]
  %v27 = vld [vmem:[%s0 + $0x20] sm:$0xff]
  %v28 = vld [vmem:[%s0 + $0x28] sm:$0xff]
  %v29 = vld [vmem:[%s0 + $0x30] sm:$0xff]
  %v30 = vld [vmem:[%s0 + $0x38] sm:$0xff]
  %v31 = vld [vmem:[%s0 + $0x40] sm:$0xff]
  %v32 = vld [vmem:[%s0 + $0x48] sm:$0xff]
  %v33 = vld [vmem:[%s0 + $0x50] sm:$0xff]
  %v34 = vld [vmem:[%s0 + $0x58] sm:$0xff]
  %v35 = vld [vmem:[%s0 + $0x60] sm:$0xff]
  %v36 = vld [vmem:[%s0 + $0x68] sm:$0xff]
  %v37 = vld [vmem:[%s0 + $0x70] sm:$0xff]
  %v38 = vld [vmem:[%s0 + $0x78] sm:$0xff]
  %v39 = vld [vmem:[%s1] sm:$0xff]
  %v40 = vld [vmem:[%s1 + $0x8] sm:$0xff]
  %v41 = vld [vmem:[%s1 + $0x10] sm:$0xff]
  %v42 = vld [vmem:[%s1 + $0x18] sm:$0xff]
  %v43 = vld [vmem:[%s1 + $0x20] sm:$0xff]
  %v44 = vld [vmem:[%s1 + $0x28] sm:$0xff]
  %v45 = vld [vmem:[%s1 + $0x30] sm:$0xff]
  %v46 = vld [vmem:[%s1 + $0x38] sm:$0xff]
  %v47 = vld [vmem:[%s1 + $0x40] sm:$0xff]
  %v48 = vld [vmem:[%s1 + $0x48] sm:$0xff]
  %v49 = vld [vmem:[%s1 + $0x50] sm:$0xff]
  %v50 = vld [vmem:[%s1 + $0x58] sm:$0xff]
  %v51 = vld [vmem:[%s1 + $0x60] sm:$0xff]
  %v52 = vld [vmem:[%s1 + $0x68] sm:$0xff]
  %v53 = vld [vmem:[%s1 + $0x70] sm:$0xff]
  %v54 = vld [vmem:[%s1 + $0x78] sm:$0xff]
  %v55 = vld [vmem:[%s1 + $0x80] sm:$0xff]
  %v56 = vld [vmem:[%s1 + $0x88] sm:$0xff]
  %v57 = vld [vmem:[%s1 + $0x90] sm:$0xff]
  %v58 = vld [vmem:[%s1 + $0x98] sm:$0xff]
  %v59 = vld [vmem:[%s1 + $0xa0] sm:$0xff]
  %v60 = vld [vmem:[%s1 + $0xa8] sm:$0xff]
  %v61 = vld [vmem:[%s1 + $0xb0] sm:$0xff]
  %v62 = vld [vmem:[%s1 + $0xb8] sm:$0xff]
  %v63 = vld [vmem:[%s1 + $0xc0] sm:$0xff]
  %v64 = vld [vmem:[%s1 + $0xc8] sm:$0xff]
  %v65 = vld [vmem:[%s1 + $0xd0] sm:$0xff]
  %v66 = vld [vmem:[%s1 + $0xd8] sm:$0xff]
  %v67 = vld [vmem:[%s1 + $0xe0] sm:$0xff]
  %v68 = vld [vmem:[%s1 + $0xe8] sm:$0xff]
  %v69 = vld [vmem:[%s1 + $0xf0] sm:$0xff]
  %v70 = vld [vmem:[%s1 + $0xf8] sm:$0xff]
  %71 = vmatprep.subr.mxu0 0.0
  %72 = vmatpush1.msra.mxu0 %v39
  %73 = vmatprep.subr.mxu0 0.0
  %74 = vmatpush1.msra.mxu0 %v40
  %75 = vmatprep.subr.mxu0 0.0
  %76 = vmatpush1.msra.mxu0 %v41
  %77 = vmatprep.subr.mxu0 0.0
  %78 = vmatpush1.msra.mxu0 %v42
  %79 = vmatprep.subr.mxu0 0.0
  %80 = vmatpush1.msra.mxu0 %v43
  %81 = vmatprep.subr.mxu0 0.0
  %82 = vmatpush1.msra.mxu0 %v44
  %83 = vmatprep.subr.mxu0 0.0
  %84 = vmatpush1.msra.mxu0 %v45
  %85 = vmatprep.subr.mxu0 0.0
  %86 = vmatpush1.msra.mxu0 %v46
  %87 = vmatprep.subr.mxu0 0.0
  %88 = vmatpush1.msra.mxu0 %v47
  %89 = vmatprep.subr.mxu0 0.0
  %90 = vmatpush1.msra.mxu0 %v48
  %91 = vmatprep.subr.mxu0 0.0
  %92 = vmatpush1.msra.mxu0 %v49
  %93 = vmatprep.subr.mxu0 0.0
  %94 = vmatpush1.msra.mxu0 %v50
  %95 = vmatprep.subr.mxu0 0.0
  %96 = vmatpush1.msra.mxu0 %v51
  %97 = vmatprep.subr.mxu0 0.0
  %98 = vmatpush1.msra.mxu0 %v52
  %99 = vmatprep.subr.mxu0 0.0
  %100 = vmatpush1.msra.mxu0 %v53
  %101 = vmatprep.subr.mxu0 0.0
  %102 = vmatpush1.msra.mxu0 %v54
  %103 = vmatprep.subr.mxu0 0.0
  %104 = vmatpush1.msra.mxu0 %v55
  %105 = vmatprep.subr.mxu0 0.0
  %106 = vmatpush1.msra.mxu0 %v56
  %107 = vmatprep.subr.mxu0 0.0
  %108 = vmatpush1.msra.mxu0 %v57
  %109 = vmatprep.subr.mxu0 0.0
  %110 = vmatpush1.msra.mxu0 %v58
  %111 = vmatprep.subr.mxu0 0.0
  %112 = vmatpush1.msra.mxu0 %v59
  %113 = vmatprep.subr.mxu0 0.0
  %114 = vmatpush1.msra.mxu0 %v60
  %115 = vmatprep.subr.mxu0 0.0
  %116 = vmatpush1.msra.mxu0 %v61
  %117 = vmatprep.subr.mxu0 0.0
  %118 = vmatpush1.msra.mxu0 %v62
  %119 = vmatprep.subr.mxu0 0.0
  %120 = vmatpush1.msra.mxu0 %v63
  %121 = vmatprep.subr.mxu0 0.0
  %122 = vmatpush1.msra.mxu0 %v64
  %123 = vmatprep.subr.mxu0 0.0
  %124 = vmatpush1.msra.mxu0 %v65
  %125 = vmatprep.subr.mxu0 0.0
  %126 = vmatpush1.msra.mxu0 %v66
  %127 = vmatprep.subr.mxu0 0.0
  %128 = vmatpush1.msra.mxu0 %v67
  %129 = vmatprep.subr.mxu0 0.0
  %130 = vmatpush1.msra.mxu0 %v68
  %131 = vmatprep.subr.mxu0 0.0
  %132 = vmatpush1.msra.mxu0 %v69
  %133 = vmatprep.subr.mxu0 0.0
  %134 = vmatpush1.msra.mxu0 %v70
  %135 = vmatprep.mubr.f32.mxu0 %v24
  %136 = vmatmul.mubr.f32.gmra.mrb[0].mxu0 %v23
  %v137 = vpop.f32.mrb[0].mxu0
  %v138 = vadd.f32 0.0, %v137
  %v139 = vpop.f32.mrb[0].mxu0
  %140 = vmatprep.mubr.f32.mxu0 %v26
  %141 = vmatmul.mubr.f32.gmra.mrb[0].mxu0 %v25
  %v142 = vpop.f32.mrb[0].mxu0
  %v143 = vadd.f32 0.0, %v142
  %v144 = vpop.f32.mrb[0].mxu0
  %145 = vmatprep.mubr.f32.mxu0 %v28
  %146 = vmatmul.mubr.f32.gmra.mrb[0].mxu0 %v27
  %v147 = vpop.f32.mrb[0].mxu0
  %v148 = vadd.f32 0.0, %v147
  %v149 = vpop.f32.mrb[0].mxu0
  %150 = vmatprep.mubr.f32.mxu0 %v30
  %151 = vmatmul.mubr.f32.gmra.mrb[0].mxu0 %v29
  %v152 = vpop.f32.mrb[0].mxu0
  %v153 = vadd.f32 0.0, %v152
  %v154 = vpop.f32.mrb[0].mxu0
  %155 = vmatprep.mubr.f32.mxu0 %v32
  %156 = vmatmul.mubr.f32.gmra.mrb[0].mxu0 %v31
  %v157 = vpop.f32.mrb[0].mxu0
  %v158 = vadd.f32 0.0, %v157
  %v159 = vpop.f32.mrb[0].mxu0
  %160 = vmatprep.mubr.f32.mxu0 %v34
  %161 = vmatmul.mubr.f32.gmra.mrb[0].mxu0 %v33
  %v162 = vpop.f32.mrb[0].mxu0
  %v163 = vadd.f32 0.0, %v162
  %v164 = vpop.f32.mrb[0].mxu0
  %165 = vmatprep.mubr.f32.mxu0 %v36
  %166 = vmatmul.mubr.f32.gmra.mrb[0].mxu0 %v35
  %v167 = vpop.f32.mrb[0].mxu0
  %v168 = vadd.f32 0.0, %v167
  %v169 = vpop.f32.mrb[0].mxu0
  %170 = vmatprep.mubr.f32.mxu0 %v38
  %171 = vmatmul.mubr.f32.gmra.mrb[0].mxu0 %v37
  %v172 = vpop.f32.mrb[0].mxu0
  %v173 = vadd.f32 0.0, %v172
  %v174 = vpop.f32.mrb[0].mxu0
  %175 = vdwg.mxu0
  %v176 = vld [vmem:[%s2] sm:$0xff]
  %v177 = vld [vmem:[%s2 + $0x8] sm:$0xff]
  %v178 = vld [vmem:[%s2 + $0x10] sm:$0xff]
  %v179 = vld [vmem:[%s2 + $0x18] sm:$0xff]
  %v180 = vld [vmem:[%s2 + $0x20] sm:$0xff]
  %v181 = vld [vmem:[%s2 + $0x28] sm:$0xff]
  %v182 = vld [vmem:[%s2 + $0x30] sm:$0xff]
  %v183 = vld [vmem:[%s2 + $0x38] sm:$0xff]
  %vm184 = vcmask 523264
  %v186 = vsel %vm184, %v176, 0
  %v189 = vsel %vm184, %v177, 0
  %v192 = vsel %vm184, %v178, 0
  %v195 = vsel %vm184, %v179, 0
  %v198 = vsel %vm184, %v180, 0
  %v201 = vsel %vm184, %v181, 0
  %v204 = vsel %vm184, %v182, 0
  %v207 = vsel %vm184, %v183, 0
  %209 = vmatprep.subr.mxu0 0.0
  %210 = vmatpush1.msra.mxu0 %v138
  %211 = vmatprep.subr.mxu0 0.0
  %212 = vmatpush1.msra.mxu0 %v143
  %213 = vmatprep.subr.mxu0 0.0
  %214 = vmatpush1.msra.mxu0 %v148
  %215 = vmatprep.subr.mxu0 0.0
  %216 = vmatpush1.msra.mxu0 %v153
  %217 = vmatprep.subr.mxu0 0.0
  %218 = vmatpush1.msra.mxu0 %v158
  %219 = vmatprep.subr.mxu0 0.0
  %220 = vmatpush1.msra.mxu0 %v163
  %221 = vmatprep.subr.mxu0 0.0
  %222 = vmatpush1.msra.mxu0 %v168
  %223 = vmatprep.subr.mxu0 0.0
  %224 = vmatpush1.msra.mxu0 %v173
  %225 = vmatprep.subr.mxu0 0.0
  %226 = vmatpush1.msra.mxu0 0.0
  %227 = vmatprep.subr.mxu0 0.0
  %228 = vmatpush1.msra.mxu0 0.0
  %229 = vmatprep.subr.mxu0 0.0
  %230 = vmatpush1.msra.mxu0 0.0
  %231 = vmatprep.subr.mxu0 0.0
  %232 = vmatpush1.msra.mxu0 0.0
  %233 = vmatprep.subr.mxu0 0.0
  %234 = vmatpush1.msra.mxu0 0.0
  %235 = vmatprep.subr.mxu0 0.0
  %236 = vmatpush1.msra.mxu0 0.0
  %237 = vmatprep.subr.mxu0 0.0
  %238 = vmatpush1.msra.mxu0 0.0
  %239 = vmatprep.subr.mxu0 0.0
  %240 = vmatpush1.msra.mxu0 0.0
  %241 = vmatprep.subr.mxu0 0.0
  %242 = vmatpush1.msra.mxu0 0.0
  %243 = vmatprep.subr.mxu0 0.0
  %244 = vmatpush1.msra.mxu0 0.0
  %245 = vmatprep.subr.mxu0 0.0
  %246 = vmatpush1.msra.mxu0 0.0
  %247 = vmatprep.subr.mxu0 0.0
  %248 = vmatpush1.msra.mxu0 0.0
  %249 = vmatprep.subr.mxu0 0.0
  %250 = vmatpush1.msra.mxu0 0.0
  %251 = vmatprep.subr.mxu0 0.0
  %252 = vmatpush1.msra.mxu0 0.0
  %253 = vmatprep.subr.mxu0 0.0
  %254 = vmatpush1.msra.mxu0 0.0
  %255 = vmatprep.subr.mxu0 0.0
  %256 = vmatpush1.msra.mxu0 0.0
  %257 = vmatprep.subr.mxu0 0.0
  %258 = vmatpush1.msra.mxu0 0.0
  %259 = vmatprep.subr.mxu0 0.0
  %260 = vmatpush1.msra.mxu0 0.0
  %261 = vmatprep.subr.mxu0 0.0
  %262 = vmatpush1.msra.mxu0 0.0
  %263 = vmatprep.subr.mxu0 0.0
  %264 = vmatpush1.msra.mxu0 0.0
  %265 = vmatprep.subr.mxu0 0.0
  %266 = vmatpush1.msra.mxu0 0.0
  %267 = vmatprep.subr.mxu0 0.0
  %268 = vmatpush1.msra.mxu0 0.0
  %269 = vmatprep.subr.mxu0 0.0
  %270 = vmatpush1.msra.mxu0 0.0
  %271 = vmatprep.subr.mxu0 0.0
  %272 = vmatpush1.msra.mxu0 0.0
  %273 = vmatprep.mubr.f32.mxu0 0.0
  %274 = vmatmul.mubr.f32.gmra.mrb[0].mxu0 %v186
  %v275 = vpop.f32.mrb[0].mxu0
  %v276 = vadd.f32 0.0, %v275
  %v277 = vpop.f32.mrb[0].mxu0
  %278 = vmatprep.mubr.f32.mxu0 0.0
  %279 = vmatmul.mubr.f32.gmra.mrb[0].mxu0 %v189
  %v280 = vpop.f32.mrb[0].mxu0
  %v281 = vadd.f32 0.0, %v280
  %v282 = vpop.f32.mrb[0].mxu0
  %283 = vmatprep.mubr.f32.mxu0 0.0
  %284 = vmatmul.mubr.f32.gmra.mrb[0].mxu0 %v192
  %v285 = vpop.f32.mrb[0].mxu0
  %v286 = vadd.f32 0.0, %v285
  %v287 = vpop.f32.mrb[0].mxu0
  %288 = vmatprep.mubr.f32.mxu0 0.0
  %289 = vmatmul.mubr.f32.gmra.mrb[0].mxu0 %v195
  %v290 = vpop.f32.mrb[0].mxu0
  %v291 = vadd.f32 0.0, %v290
  %v292 = vpop.f32.mrb[0].mxu0
  %293 = vmatprep.mubr.f32.mxu0 0.0
  %294 = vmatmul.mubr.f32.gmra.mrb[0].mxu0 %v198
  %v295 = vpop.f32.mrb[0].mxu0
  %v296 = vadd.f32 0.0, %v295
  %v297 = vpop.f32.mrb[0].mxu0
  %298 = vmatprep.mubr.f32.mxu0 0.0
  %299 = vmatmul.mubr.f32.gmra.mrb[0].mxu0 %v201
  %v300 = vpop.f32.mrb[0].mxu0
  %v301 = vadd.f32 0.0, %v300
  %v302 = vpop.f32.mrb[0].mxu0
  %303 = vmatprep.mubr.f32.mxu0 0.0
  %304 = vmatmul.mubr.f32.gmra.mrb[0].mxu0 %v204
  %v305 = vpop.f32.mrb[0].mxu0
  %v306 = vadd.f32 0.0, %v305
  %v307 = vpop.f32.mrb[0].mxu0
  %308 = vmatprep.mubr.f32.mxu0 0.0
  %309 = vmatmul.mubr.f32.gmra.mrb[0].mxu0 %v207
  %v310 = vpop.f32.mrb[0].mxu0
  %v311 = vadd.f32 0.0, %v310
  %v312 = vpop.f32.mrb[0].mxu0
  %313 = vdwg.mxu0
  %v314 = vsel %vm184, %v276, 0.0
  %315 = vadd.xlane.f32.xlu0 %v314
  %v316 = vpop.xlane.xlu0 %315
  %v317 = vsel %vm184, %v281, 0.0
  %318 = vadd.xlane.f32.xlu0 %v317
  %v319 = vpop.xlane.xlu0 %318
  %v320 = vsel %vm184, %v286, 0.0
  %321 = vadd.xlane.f32.xlu0 %v320
  %v322 = vpop.xlane.xlu0 %321
  %v323 = vsel %vm184, %v291, 0.0
  %324 = vadd.xlane.f32.xlu0 %v323
  %v325 = vpop.xlane.xlu0 %324
  %v326 = vsel %vm184, %v296, 0.0
  %327 = vadd.xlane.f32.xlu0 %v326
  %v328 = vpop.xlane.xlu0 %327
  %v329 = vsel %vm184, %v301, 0.0
  %330 = vadd.xlane.f32.xlu0 %v329
  %v331 = vpop.xlane.xlu0 %330
  %v332 = vsel %vm184, %v306, 0.0
  %333 = vadd.xlane.f32.xlu0 %v332
  %v334 = vpop.xlane.xlu0 %333
  %v335 = vsel %vm184, %v311, 0.0
  %336 = vadd.xlane.f32.xlu0 %v335
  %v337 = vpop.xlane.xlu0 %336
  %v338 = vld [vmem:[%s4] sm:$0xff]
  %v339 = vld [vmem:[%s4 + $0x8] sm:$0xff]
  %v340 = vld [vmem:[%s4 + $0x10] sm:$0xff]
  %v341 = vld [vmem:[%s4 + $0x18] sm:$0xff]
  %v342 = vld [vmem:[%s4 + $0x20] sm:$0xff]
  %v343 = vld [vmem:[%s4 + $0x28] sm:$0xff]
  %v344 = vld [vmem:[%s4 + $0x30] sm:$0xff]
  %v345 = vld [vmem:[%s4 + $0x38] sm:$0xff]
  %v347 = vsel %vm184, %v338, 0
  %v350 = vsel %vm184, %v339, 0
  %v353 = vsel %vm184, %v340, 0
  %v356 = vsel %vm184, %v341, 0
  %v359 = vsel %vm184, %v342, 0
  %v362 = vsel %vm184, %v343, 0
  %v365 = vsel %vm184, %v344, 0
  %v368 = vsel %vm184, %v345, 0
  %370 = vmatprep.subr.mxu0 0.0
  %371 = vmatpush1.msra.mxu0 %v316
  %372 = vmatprep.subr.mxu0 0.0
  %373 = vmatpush1.msra.mxu0 %v319
  %374 = vmatprep.subr.mxu0 0.0
  %375 = vmatpush1.msra.mxu0 %v322
  %376 = vmatprep.subr.mxu0 0.0
  %377 = vmatpush1.msra.mxu0 %v325
  %378 = vmatprep.subr.mxu0 0.0
  %379 = vmatpush1.msra.mxu0 %v328
  %380 = vmatprep.subr.mxu0 0.0
  %381 = vmatpush1.msra.mxu0 %v331
  %382 = vmatprep.subr.mxu0 0.0
  %383 = vmatpush1.msra.mxu0 %v334
  %384 = vmatprep.subr.mxu0 0.0
  %385 = vmatpush1.msra.mxu0 %v337
  %386 = vmatprep.subr.mxu0 0.0
  %387 = vmatpush1.msra.mxu0 0.0
  %388 = vmatprep.subr.mxu0 0.0
  %389 = vmatpush1.msra.mxu0 0.0
  %390 = vmatprep.subr.mxu0 0.0
  %391 = vmatpush1.msra.mxu0 0.0
  %392 = vmatprep.subr.mxu0 0.0
  %393 = vmatpush1.msra.mxu0 0.0
  %394 = vmatprep.subr.mxu0 0.0
  %395 = vmatpush1.msra.mxu0 0.0
  %396 = vmatprep.subr.mxu0 0.0
  %397 = vmatpush1.msra.mxu0 0.0
  %398 = vmatprep.subr.mxu0 0.0
  %399 = vmatpush1.msra.mxu0 0.0
  %400 = vmatprep.subr.mxu0 0.0
  %401 = vmatpush1.msra.mxu0 0.0
  %402 = vmatprep.subr.mxu0 0.0
  %403 = vmatpush1.msra.mxu0 0.0
  %404 = vmatprep.subr.mxu0 0.0
  %405 = vmatpush1.msra.mxu0 0.0
  %406 = vmatprep.subr.mxu0 0.0
  %407 = vmatpush1.msra.mxu0 0.0
  %408 = vmatprep.subr.mxu0 0.0
  %409 = vmatpush1.msra.mxu0 0.0
  %410 = vmatprep.subr.mxu0 0.0
  %411 = vmatpush1.msra.mxu0 0.0
  %412 = vmatprep.subr.mxu0 0.0
  %413 = vmatpush1.msra.mxu0 0.0
  %414 = vmatprep.subr.mxu0 0.0
  %415 = vmatpush1.msra.mxu0 0.0
  %416 = vmatprep.subr.mxu0 0.0
  %417 = vmatpush1.msra.mxu0 0.0
  %418 = vmatprep.subr.mxu0 0.0
  %419 = vmatpush1.msra.mxu0 0.0
  %420 = vmatprep.subr.mxu0 0.0
  %421 = vmatpush1.msra.mxu0 0.0
  %422 = vmatprep.subr.mxu0 0.0
  %423 = vmatpush1.msra.mxu0 0.0
  %424 = vmatprep.subr.mxu0 0.0
  %425 = vmatpush1.msra.mxu0 0.0
  %426 = vmatprep.subr.mxu0 0.0
  %427 = vmatpush1.msra.mxu0 0.0
  %428 = vmatprep.subr.mxu0 0.0
  %429 = vmatpush1.msra.mxu0 0.0
  %430 = vmatprep.subr.mxu0 0.0
  %431 = vmatpush1.msra.mxu0 0.0
  %432 = vmatprep.subr.mxu0 0.0
  %433 = vmatpush1.msra.mxu0 0.0
  %434 = vmatprep.mubr.f32.mxu0 0.0
  %435 = vmatmul.mubr.f32.gmra.mrb[0].mxu0 %v347
  %v436 = vpop.f32.mrb[0].mxu0
  %v437 = vadd.f32 0.0, %v436
  %v438 = vpop.f32.mrb[0].mxu0
  %439 = vmatprep.mubr.f32.mxu0 0.0
  %440 = vmatmul.mubr.f32.gmra.mrb[0].mxu0 %v350
  %v441 = vpop.f32.mrb[0].mxu0
  %v442 = vadd.f32 0.0, %v441
  %v443 = vpop.f32.mrb[0].mxu0
  %444 = vmatprep.mubr.f32.mxu0 0.0
  %445 = vmatmul.mubr.f32.gmra.mrb[0].mxu0 %v353
  %v446 = vpop.f32.mrb[0].mxu0
  %v447 = vadd.f32 0.0, %v446
  %v448 = vpop.f32.mrb[0].mxu0
  %449 = vmatprep.mubr.f32.mxu0 0.0
  %450 = vmatmul.mubr.f32.gmra.mrb[0].mxu0 %v356
  %v451 = vpop.f32.mrb[0].mxu0
  %v452 = vadd.f32 0.0, %v451
  %v453 = vpop.f32.mrb[0].mxu0
  %454 = vmatprep.mubr.f32.mxu0 0.0
  %455 = vmatmul.mubr.f32.gmra.mrb[0].mxu0 %v359
  %v456 = vpop.f32.mrb[0].mxu0
  %v457 = vadd.f32 0.0, %v456
  %v458 = vpop.f32.mrb[0].mxu0
  %459 = vmatprep.mubr.f32.mxu0 0.0
  %460 = vmatmul.mubr.f32.gmra.mrb[0].mxu0 %v362
  %v461 = vpop.f32.mrb[0].mxu0
  %v462 = vadd.f32 0.0, %v461
  %v463 = vpop.f32.mrb[0].mxu0
  %464 = vmatprep.mubr.f32.mxu0 0.0
  %465 = vmatmul.mubr.f32.gmra.mrb[0].mxu0 %v365
  %v466 = vpop.f32.mrb[0].mxu0
  %v467 = vadd.f32 0.0, %v466
  %v468 = vpop.f32.mrb[0].mxu0
  %469 = vmatprep.mubr.f32.mxu0 0.0
  %470 = vmatmul.mubr.f32.gmra.mrb[0].mxu0 %v368
  %v471 = vpop.f32.mrb[0].mxu0
  %v472 = vadd.f32 0.0, %v471
  %v473 = vpop.f32.mrb[0].mxu0
  %474 = vdwg.mxu0
  %v475 = vmul.f32 %v437, 0.0009765625
  %v476 = vmul.f32 %v442, 0.0009765625
  %v477 = vmul.f32 %v447, 0.0009765625
  %v478 = vmul.f32 %v452, 0.0009765625
  %v479 = vmul.f32 %v457, 0.0009765625
  %v480 = vmul.f32 %v462, 0.0009765625
  %v481 = vmul.f32 %v467, 0.0009765625
  %v482 = vmul.f32 %v472, 0.0009765625
  %484 = vset.pattern.permute.xlu0 0
  %485 = vperm.xlu0 %484, %v475
  %v486 = vpop.permute.xlu0 %485
  %489 = vset.pattern.permute.xlu0 0
  %490 = vperm.xlu0 %489, %v476
  %v491 = vpop.permute.xlu0 %490
  %494 = vset.pattern.permute.xlu0 0
  %495 = vperm.xlu0 %494, %v477
  %v496 = vpop.permute.xlu0 %495
  %499 = vset.pattern.permute.xlu0 0
  %500 = vperm.xlu0 %499, %v478
  %v501 = vpop.permute.xlu0 %500
  %504 = vset.pattern.permute.xlu0 0
  %505 = vperm.xlu0 %504, %v479
  %v506 = vpop.permute.xlu0 %505
  %509 = vset.pattern.permute.xlu0 0
  %510 = vperm.xlu0 %509, %v480
  %v511 = vpop.permute.xlu0 %510
  %514 = vset.pattern.permute.xlu0 0
  %515 = vperm.xlu0 %514, %v481
  %v516 = vpop.permute.xlu0 %515
  %519 = vset.pattern.permute.xlu0 0
  %520 = vperm.xlu0 %519, %v482
  %v521 = vpop.permute.xlu0 %520
  %v523 = vsub.f32 %v276, %v486
  %v524 = vsub.f32 %v281, %v491
  %v525 = vsub.f32 %v286, %v496
  %v526 = vsub.f32 %v291, %v501
  %v527 = vsub.f32 %v296, %v506
  %v528 = vsub.f32 %v301, %v511
  %v529 = vsub.f32 %v306, %v516
  %v530 = vsub.f32 %v311, %v521
  %v531 = vmul.f32 %v523, %v523
  %v532 = vmul.f32 %v524, %v524
  %v533 = vmul.f32 %v525, %v525
  %v534 = vmul.f32 %v526, %v526
  %v535 = vmul.f32 %v527, %v527
  %v536 = vmul.f32 %v528, %v528
  %v537 = vmul.f32 %v529, %v529
  %v538 = vmul.f32 %v530, %v530
  %v539 = vsel %vm184, %v531, 0.0
  %540 = vadd.xlane.f32.xlu0 %v539
  %v541 = vpop.xlane.xlu0 %540
  %v542 = vsel %vm184, %v532, 0.0
  %543 = vadd.xlane.f32.xlu0 %v542
  %v544 = vpop.xlane.xlu0 %543
  %v545 = vsel %vm184, %v533, 0.0
  %546 = vadd.xlane.f32.xlu0 %v545
  %v547 = vpop.xlane.xlu0 %546
  %v548 = vsel %vm184, %v534, 0.0
  %549 = vadd.xlane.f32.xlu0 %v548
  %v550 = vpop.xlane.xlu0 %549
  %v551 = vsel %vm184, %v535, 0.0
  %552 = vadd.xlane.f32.xlu0 %v551
  %v553 = vpop.xlane.xlu0 %552
  %v554 = vsel %vm184, %v536, 0.0
  %555 = vadd.xlane.f32.xlu0 %v554
  %v556 = vpop.xlane.xlu0 %555
  %v557 = vsel %vm184, %v537, 0.0
  %558 = vadd.xlane.f32.xlu0 %v557
  %v559 = vpop.xlane.xlu0 %558
  %v560 = vsel %vm184, %v538, 0.0
  %561 = vadd.xlane.f32.xlu0 %v560
  %v562 = vpop.xlane.xlu0 %561
  %563 = vmatprep.subr.mxu0 0.0
  %564 = vmatpush1.msra.mxu0 %v541
  %565 = vmatprep.subr.mxu0 0.0
  %566 = vmatpush1.msra.mxu0 %v544
  %567 = vmatprep.subr.mxu0 0.0
  %568 = vmatpush1.msra.mxu0 %v547
  %569 = vmatprep.subr.mxu0 0.0
  %570 = vmatpush1.msra.mxu0 %v550
  %571 = vmatprep.subr.mxu0 0.0
  %572 = vmatpush1.msra.mxu0 %v553
  %573 = vmatprep.subr.mxu0 0.0
  %574 = vmatpush1.msra.mxu0 %v556
  %575 = vmatprep.subr.mxu0 0.0
  %576 = vmatpush1.msra.mxu0 %v559
  %577 = vmatprep.subr.mxu0 0.0
  %578 = vmatpush1.msra.mxu0 %v562
  %579 = vmatprep.subr.mxu0 0.0
  %580 = vmatpush1.msra.mxu0 0.0
  %581 = vmatprep.subr.mxu0 0.0
  %582 = vmatpush1.msra.mxu0 0.0
  %583 = vmatprep.subr.mxu0 0.0
  %584 = vmatpush1.msra.mxu0 0.0
  %585 = vmatprep.subr.mxu0 0.0
  %586 = vmatpush1.msra.mxu0 0.0
  %587 = vmatprep.subr.mxu0 0.0
  %588 = vmatpush1.msra.mxu0 0.0
  %589 = vmatprep.subr.mxu0 0.0
  %590 = vmatpush1.msra.mxu0 0.0
  %591 = vmatprep.subr.mxu0 0.0
  %592 = vmatpush1.msra.mxu0 0.0
  %593 = vmatprep.subr.mxu0 0.0
  %594 = vmatpush1.msra.mxu0 0.0
  %595 = vmatprep.subr.mxu0 0.0
  %596 = vmatpush1.msra.mxu0 0.0
  %597 = vmatprep.subr.mxu0 0.0
  %598 = vmatpush1.msra.mxu0 0.0
  %599 = vmatprep.subr.mxu0 0.0
  %600 = vmatpush1.msra.mxu0 0.0
  %601 = vmatprep.subr.mxu0 0.0
  %602 = vmatpush1.msra.mxu0 0.0
  %603 = vmatprep.subr.mxu0 0.0
  %604 = vmatpush1.msra.mxu0 0.0
  %605 = vmatprep.subr.mxu0 0.0
  %606 = vmatpush1.msra.mxu0 0.0
  %607 = vmatprep.subr.mxu0 0.0
  %608 = vmatpush1.msra.mxu0 0.0
  %609 = vmatprep.subr.mxu0 0.0
  %610 = vmatpush1.msra.mxu0 0.0
  %611 = vmatprep.subr.mxu0 0.0
  %612 = vmatpush1.msra.mxu0 0.0
  %613 = vmatprep.subr.mxu0 0.0
  %614 = vmatpush1.msra.mxu0 0.0
  %615 = vmatprep.subr.mxu0 0.0
  %616 = vmatpush1.msra.mxu0 0.0
  %617 = vmatprep.subr.mxu0 0.0
  %618 = vmatpush1.msra.mxu0 0.0
  %619 = vmatprep.subr.mxu0 0.0
  %620 = vmatpush1.msra.mxu0 0.0
  %621 = vmatprep.subr.mxu0 0.0
  %622 = vmatpush1.msra.mxu0 0.0
  %623 = vmatprep.subr.mxu0 0.0
  %624 = vmatpush1.msra.mxu0 0.0
  %625 = vmatprep.subr.mxu0 0.0
  %626 = vmatpush1.msra.mxu0 0.0
  %627 = vmatprep.mubr.f32.mxu0 0.0
  %628 = vmatmul.mubr.f32.gmra.mrb[0].mxu0 %v347
  %v629 = vpop.f32.mrb[0].mxu0
  %v630 = vadd.f32 0.0, %v629
  %v631 = vpop.f32.mrb[0].mxu0
  %632 = vmatprep.mubr.f32.mxu0 0.0
  %633 = vmatmul.mubr.f32.gmra.mrb[0].mxu0 %v350
  %v634 = vpop.f32.mrb[0].mxu0
  %v635 = vadd.f32 0.0, %v634
  %v636 = vpop.f32.mrb[0].mxu0
  %637 = vmatprep.mubr.f32.mxu0 0.0
  %638 = vmatmul.mubr.f32.gmra.mrb[0].mxu0 %v353
  %v639 = vpop.f32.mrb[0].mxu0
  %v640 = vadd.f32 0.0, %v639
  %v641 = vpop.f32.mrb[0].mxu0
  %642 = vmatprep.mubr.f32.mxu0 0.0
  %643 = vmatmul.mubr.f32.gmra.mrb[0].mxu0 %v356
  %v644 = vpop.f32.mrb[0].mxu0
  %v645 = vadd.f32 0.0, %v644
  %v646 = vpop.f32.mrb[0].mxu0
  %647 = vmatprep.mubr.f32.mxu0 0.0
  %648 = vmatmul.mubr.f32.gmra.mrb[0].mxu0 %v359
  %v649 = vpop.f32.mrb[0].mxu0
  %v650 = vadd.f32 0.0, %v649
  %v651 = vpop.f32.mrb[0].mxu0
  %652 = vmatprep.mubr.f32.mxu0 0.0
  %653 = vmatmul.mubr.f32.gmra.mrb[0].mxu0 %v362
  %v654 = vpop.f32.mrb[0].mxu0
  %v655 = vadd.f32 0.0, %v654
  %v656 = vpop.f32.mrb[0].mxu0
  %657 = vmatprep.mubr.f32.mxu0 0.0
  %658 = vmatmul.mubr.f32.gmra.mrb[0].mxu0 %v365
  %v659 = vpop.f32.mrb[0].mxu0
  %v660 = vadd.f32 0.0, %v659
  %v661 = vpop.f32.mrb[0].mxu0
  %662 = vmatprep.mubr.f32.mxu0 0.0
  %663 = vmatmul.mubr.f32.gmra.mrb[0].mxu0 %v368
  %v664 = vpop.f32.mrb[0].mxu0
  %v665 = vadd.f32 0.0, %v664
  %v666 = vpop.f32.mrb[0].mxu0
  %667 = vdwg.mxu0
  %v668 = vmul.f32 %v630, 0.0009765625
  %v669 = vmul.f32 %v635, 0.0009765625
  %v670 = vmul.f32 %v640, 0.0009765625
  %v671 = vmul.f32 %v645, 0.0009765625
  %v672 = vmul.f32 %v650, 0.0009765625
  %v673 = vmul.f32 %v655, 0.0009765625
  %v674 = vmul.f32 %v660, 0.0009765625
  %v675 = vmul.f32 %v665, 0.0009765625
  %v676 = vld [vmem:[%s5] sm:$0xff]
  %v677 = vld [vmem:[%s5 + $0x8] sm:$0xff]
  %v678 = vld [vmem:[%s5 + $0x10] sm:$0xff]
  %v679 = vld [vmem:[%s5 + $0x18] sm:$0xff]
  %v680 = vld [vmem:[%s5 + $0x20] sm:$0xff]
  %v681 = vld [vmem:[%s5 + $0x28] sm:$0xff]
  %v682 = vld [vmem:[%s5 + $0x30] sm:$0xff]
  %v683 = vld [vmem:[%s5 + $0x38] sm:$0xff]
  %v684 = vadd.f32 %v668, 1e-05
  %v685 = vadd.f32 %v669, 1e-05
  %v686 = vadd.f32 %v670, 1e-05
  %v687 = vadd.f32 %v671, 1e-05
  %v688 = vadd.f32 %v672, 1e-05
  %v689 = vadd.f32 %v673, 1e-05
  %v690 = vadd.f32 %v674, 1e-05
  %v691 = vadd.f32 %v675, 1e-05
  %v692 = vrsqrt.pop %v684
  %v693 = vrsqrt.pop %v685
  %v694 = vrsqrt.pop %v686
  %v695 = vrsqrt.pop %v687
  %v696 = vrsqrt.pop %v688
  %v697 = vrsqrt.pop %v689
  %v698 = vrsqrt.pop %v690
  %v699 = vrsqrt.pop %v691
  %v700 = vmul.f32 %v676, %v692
  %v701 = vmul.f32 %v677, %v693
  %v702 = vmul.f32 %v678, %v694
  %v703 = vmul.f32 %v679, %v695
  %v704 = vmul.f32 %v680, %v696
  %v705 = vmul.f32 %v681, %v697
  %v706 = vmul.f32 %v682, %v698
  %v707 = vmul.f32 %v683, %v699
  %v708 = vmul.f32 %v475, %v700
  %v709 = vmul.f32 %v476, %v701
  %v710 = vmul.f32 %v477, %v702
  %v711 = vmul.f32 %v478, %v703
  %v712 = vmul.f32 %v479, %v704
  %v713 = vmul.f32 %v480, %v705
  %v714 = vmul.f32 %v481, %v706
  %v715 = vmul.f32 %v482, %v707
  %724 = vrot.lane.b32.xlu0 %v708, 1
  %v725 = vpop.permute.xlu0 %724
  %726 = vrot.lane.b32.xlu0 %v709, 1
  %v727 = vpop.permute.xlu0 %726
  %728 = vrot.lane.b32.xlu0 %v710, 1
  %v729 = vpop.permute.xlu0 %728
  %730 = vrot.lane.b32.xlu0 %v711, 1
  %v731 = vpop.permute.xlu0 %730
  %732 = vrot.lane.b32.xlu0 %v712, 1
  %v733 = vpop.permute.xlu0 %732
  %734 = vrot.lane.b32.xlu0 %v713, 1
  %v735 = vpop.permute.xlu0 %734
  %736 = vrot.lane.b32.xlu0 %v714, 1
  %v737 = vpop.permute.xlu0 %736
  %738 = vrot.lane.b32.xlu0 %v715, 1
  %v739 = vpop.permute.xlu0 %738
  %v748 = vsub.f32 %v676, %v725
  %v749 = vsub.f32 %v677, %v727
  %v750 = vsub.f32 %v678, %v729
  %v751 = vsub.f32 %v679, %v731
  %v752 = vsub.f32 %v680, %v733
  %v753 = vsub.f32 %v681, %v735
  %v754 = vsub.f32 %v682, %v737
  %v755 = vsub.f32 %v683, %v739
  %757 = vset.pattern.permute.xlu0 0
  %758 = vperm.xlu0 %757, %v700
  %v759 = vpop.permute.xlu0 %758
  %762 = vset.pattern.permute.xlu0 0
  %763 = vperm.xlu0 %762, %v701
  %v764 = vpop.permute.xlu0 %763
  %767 = vset.pattern.permute.xlu0 0
  %768 = vperm.xlu0 %767, %v702
  %v769 = vpop.permute.xlu0 %768
  %772 = vset.pattern.permute.xlu0 0
  %773 = vperm.xlu0 %772, %v703
  %v774 = vpop.permute.xlu0 %773
  %777 = vset.pattern.permute.xlu0 0
  %778 = vperm.xlu0 %777, %v704
  %v779 = vpop.permute.xlu0 %778
  %782 = vset.pattern.permute.xlu0 0
  %783 = vperm.xlu0 %782, %v705
  %v784 = vpop.permute.xlu0 %783
  %787 = vset.pattern.permute.xlu0 0
  %788 = vperm.xlu0 %787, %v706
  %v789 = vpop.permute.xlu0 %788
  %792 = vset.pattern.permute.xlu0 0
  %793 = vperm.xlu0 %792, %v707
  %v794 = vpop.permute.xlu0 %793
  %v796 = vmul.f32 %v276, %v759
  %v797 = vmul.f32 %v281, %v764
  %v798 = vmul.f32 %v286, %v769
  %v799 = vmul.f32 %v291, %v774
  %v800 = vmul.f32 %v296, %v779
  %v801 = vmul.f32 %v301, %v784
  %v802 = vmul.f32 %v306, %v789
  %v803 = vmul.f32 %v311, %v794
  %805 = vset.pattern.permute.xlu0 1
  %806 = vperm.xlu0 %805, %v748
  %v807 = vpop.permute.xlu0 %806
  %810 = vset.pattern.permute.xlu0 1
  %811 = vperm.xlu0 %810, %v749
  %v812 = vpop.permute.xlu0 %811
  %815 = vset.pattern.permute.xlu0 1
  %816 = vperm.xlu0 %815, %v750
  %v817 = vpop.permute.xlu0 %816
  %820 = vset.pattern.permute.xlu0 1
  %821 = vperm.xlu0 %820, %v751
  %v822 = vpop.permute.xlu0 %821
  %825 = vset.pattern.permute.xlu0 1
  %826 = vperm.xlu0 %825, %v752
  %v827 = vpop.permute.xlu0 %826
  %830 = vset.pattern.permute.xlu0 1
  %831 = vperm.xlu0 %830, %v753
  %v832 = vpop.permute.xlu0 %831
  %835 = vset.pattern.permute.xlu0 1
  %836 = vperm.xlu0 %835, %v754
  %v837 = vpop.permute.xlu0 %836
  %840 = vset.pattern.permute.xlu0 1
  %841 = vperm.xlu0 %840, %v755
  %v842 = vpop.permute.xlu0 %841
  %v844 = vadd.f32 %v796, %v807
  %v845 = vadd.f32 %v797, %v812
  %v846 = vadd.f32 %v798, %v817
  %v847 = vadd.f32 %v799, %v822
  %v848 = vadd.f32 %v800, %v827
  %v849 = vadd.f32 %v801, %v832
  %v850 = vadd.f32 %v802, %v837
  %v851 = vadd.f32 %v803, %v842
  %v852 = vsub.f32 0.0, %v844
  %v853 = vsub.f32 0.0, %v845
  %v854 = vsub.f32 0.0, %v846
  %v855 = vsub.f32 0.0, %v847
  %v856 = vsub.f32 0.0, %v848
  %v857 = vsub.f32 0.0, %v849
  %v858 = vsub.f32 0.0, %v850
  %v859 = vsub.f32 0.0, %v851
  %v860 = vmul.f32 %v852, 1.442695
  %v861 = vpow.pop %v860
  %v862 = vmul.f32 %v853, 1.442695
  %v863 = vpow.pop %v862
  %v864 = vmul.f32 %v854, 1.442695
  %v865 = vpow.pop %v864
  %v866 = vmul.f32 %v855, 1.442695
  %v867 = vpow.pop %v866
  %v868 = vmul.f32 %v856, 1.442695
  %v869 = vpow.pop %v868
  %v870 = vmul.f32 %v857, 1.442695
  %v871 = vpow.pop %v870
  %v872 = vmul.f32 %v858, 1.442695
  %v873 = vpow.pop %v872
  %v874 = vmul.f32 %v859, 1.442695
  %v875 = vpow.pop %v874
  %v876 = vadd.f32 %v861, 1.0
  %v877 = vadd.f32 %v863, 1.0
  %v878 = vadd.f32 %v865, 1.0
  %v879 = vadd.f32 %v867, 1.0
  %v880 = vadd.f32 %v869, 1.0
  %v881 = vadd.f32 %v871, 1.0
  %v882 = vadd.f32 %v873, 1.0
  %v883 = vadd.f32 %v875, 1.0
  %v884 = vrcp.pop %v876
  %v885 = vmul.f32 1.0, %v884
  %v886 = vrcp.pop %v877
  %v887 = vmul.f32 1.0, %v886
  %v888 = vrcp.pop %v878
  %v889 = vmul.f32 1.0, %v888
  %v890 = vrcp.pop %v879
  %v891 = vmul.f32 1.0, %v890
  %v892 = vrcp.pop %v880
  %v893 = vmul.f32 1.0, %v892
  %v894 = vrcp.pop %v881
  %v895 = vmul.f32 1.0, %v894
  %v896 = vrcp.pop %v882
  %v897 = vmul.f32 1.0, %v896
  %v898 = vrcp.pop %v883
  %v899 = vmul.f32 1.0, %v898
  %v900 = vld [vmem:[%s3] sm:$0xff]
  %v901 = vld [vmem:[%s3 + $0x8] sm:$0xff]
  %v902 = vld [vmem:[%s3 + $0x10] sm:$0xff]
  %v903 = vld [vmem:[%s3 + $0x18] sm:$0xff]
  %v904 = vld [vmem:[%s3 + $0x20] sm:$0xff]
  %v905 = vld [vmem:[%s3 + $0x28] sm:$0xff]
  %v906 = vld [vmem:[%s3 + $0x30] sm:$0xff]
  %v907 = vld [vmem:[%s3 + $0x38] sm:$0xff]
  %v908 = vld [vmem:[%s3 + $0x40] sm:$0xff]
  %v909 = vld [vmem:[%s3 + $0x48] sm:$0xff]
  %v910 = vld [vmem:[%s3 + $0x50] sm:$0xff]
  %v911 = vld [vmem:[%s3 + $0x58] sm:$0xff]
  %v912 = vld [vmem:[%s3 + $0x60] sm:$0xff]
  %v913 = vld [vmem:[%s3 + $0x68] sm:$0xff]
  %v914 = vld [vmem:[%s3 + $0x70] sm:$0xff]
  %v915 = vld [vmem:[%s3 + $0x78] sm:$0xff]
  %v917 = vsel %vm184, %v885, 0
  %v920 = vsel %vm184, %v887, 0
  %v923 = vsel %vm184, %v889, 0
  %v926 = vsel %vm184, %v891, 0
  %v929 = vsel %vm184, %v893, 0
  %v932 = vsel %vm184, %v895, 0
  %v935 = vsel %vm184, %v897, 0
  %v938 = vsel %vm184, %v899, 0
  %940 = vmatprep.subr.mxu0 %v901
  %941 = vmatpush1.msra.mxu0 %v900
  %942 = vmatprep.subr.mxu0 %v903
  %943 = vmatpush1.msra.mxu0 %v902
  %944 = vmatprep.subr.mxu0 %v905
  %945 = vmatpush1.msra.mxu0 %v904
  %946 = vmatprep.subr.mxu0 %v907
  %947 = vmatpush1.msra.mxu0 %v906
  %948 = vmatprep.subr.mxu0 %v909
  %949 = vmatpush1.msra.mxu0 %v908
  %950 = vmatprep.subr.mxu0 %v911
  %951 = vmatpush1.msra.mxu0 %v910
  %952 = vmatprep.subr.mxu0 %v913
  %953 = vmatpush1.msra.mxu0 %v912
  %954 = vmatprep.subr.mxu0 %v915
  %955 = vmatpush1.msra.mxu0 %v914
  %956 = vmatprep.subr.mxu0 0.0
  %957 = vmatpush1.msra.mxu0 0.0
  %958 = vmatprep.subr.mxu0 0.0
  %959 = vmatpush1.msra.mxu0 0.0
  %960 = vmatprep.subr.mxu0 0.0
  %961 = vmatpush1.msra.mxu0 0.0
  %962 = vmatprep.subr.mxu0 0.0
  %963 = vmatpush1.msra.mxu0 0.0
  %964 = vmatprep.subr.mxu0 0.0
  %965 = vmatpush1.msra.mxu0 0.0
  %966 = vmatprep.subr.mxu0 0.0
  %967 = vmatpush1.msra.mxu0 0.0
  %968 = vmatprep.subr.mxu0 0.0
  %969 = vmatpush1.msra.mxu0 0.0
  %970 = vmatprep.subr.mxu0 0.0
  %971 = vmatpush1.msra.mxu0 0.0
  %972 = vmatprep.subr.mxu0 0.0
  %973 = vmatpush1.msra.mxu0 0.0
  %974 = vmatprep.subr.mxu0 0.0
  %975 = vmatpush1.msra.mxu0 0.0
  %976 = vmatprep.subr.mxu0 0.0
  %977 = vmatpush1.msra.mxu0 0.0
  %978 = vmatprep.subr.mxu0 0.0
  %979 = vmatpush1.msra.mxu0 0.0
  %980 = vmatprep.subr.mxu0 0.0
  %981 = vmatpush1.msra.mxu0 0.0
  %982 = vmatprep.subr.mxu0 0.0
  %983 = vmatpush1.msra.mxu0 0.0
  %984 = vmatprep.subr.mxu0 0.0
  %985 = vmatpush1.msra.mxu0 0.0
  %986 = vmatprep.subr.mxu0 0.0
  %987 = vmatpush1.msra.mxu0 0.0
  %988 = vmatprep.subr.mxu0 0.0
  %989 = vmatpush1.msra.mxu0 0.0
  %990 = vmatprep.subr.mxu0 0.0
  %991 = vmatpush1.msra.mxu0 0.0
  %992 = vmatprep.subr.mxu0 0.0
  %993 = vmatpush1.msra.mxu0 0.0
  %994 = vmatprep.subr.mxu0 0.0
  %995 = vmatpush1.msra.mxu0 0.0
  %996 = vmatprep.subr.mxu0 0.0
  %997 = vmatpush1.msra.mxu0 0.0
  %998 = vmatprep.subr.mxu0 0.0
  %999 = vmatpush1.msra.mxu0 0.0
  %1000 = vmatprep.subr.mxu0 0.0
  %1001 = vmatpush1.msra.mxu0 0.0
  %1002 = vmatprep.subr.mxu0 0.0
  %1003 = vmatpush1.msra.mxu0 0.0
  %1004 = vmatprep.mubr.f32.mxu0 0.0
  %1005 = vmatmul.mubr.f32.gmra.mrb[0].mxu0 %v917
  %v1006 = vpop.f32.mrb[0].mxu0
  %v1007 = vadd.f32 0.0, %v1006
  %v1008 = vpop.f32.mrb[0].mxu0
  %v1009 = vadd.f32 0.0, %v1008
  %1010 = vmatprep.mubr.f32.mxu0 0.0
  %1011 = vmatmul.mubr.f32.gmra.mrb[0].mxu0 %v920
  %v1012 = vpop.f32.mrb[0].mxu0
  %v1013 = vadd.f32 0.0, %v1012
  %v1014 = vpop.f32.mrb[0].mxu0
  %v1015 = vadd.f32 0.0, %v1014
  %1016 = vmatprep.mubr.f32.mxu0 0.0
  %1017 = vmatmul.mubr.f32.gmra.mrb[0].mxu0 %v923
  %v1018 = vpop.f32.mrb[0].mxu0
  %v1019 = vadd.f32 0.0, %v1018
  %v1020 = vpop.f32.mrb[0].mxu0
  %v1021 = vadd.f32 0.0, %v1020
  %1022 = vmatprep.mubr.f32.mxu0 0.0
  %1023 = vmatmul.mubr.f32.gmra.mrb[0].mxu0 %v926
  %v1024 = vpop.f32.mrb[0].mxu0
  %v1025 = vadd.f32 0.0, %v1024
  %v1026 = vpop.f32.mrb[0].mxu0
  %v1027 = vadd.f32 0.0, %v1026
  %1028 = vmatprep.mubr.f32.mxu0 0.0
  %1029 = vmatmul.mubr.f32.gmra.mrb[0].mxu0 %v929
  %v1030 = vpop.f32.mrb[0].mxu0
  %v1031 = vadd.f32 0.0, %v1030
  %v1032 = vpop.f32.mrb[0].mxu0
  %v1033 = vadd.f32 0.0, %v1032
  %1034 = vmatprep.mubr.f32.mxu0 0.0
  %1035 = vmatmul.mubr.f32.gmra.mrb[0].mxu0 %v932
  %v1036 = vpop.f32.mrb[0].mxu0
  %v1037 = vadd.f32 0.0, %v1036
  %v1038 = vpop.f32.mrb[0].mxu0
  %v1039 = vadd.f32 0.0, %v1038
  %1040 = vmatprep.mubr.f32.mxu0 0.0
  %1041 = vmatmul.mubr.f32.gmra.mrb[0].mxu0 %v935
  %v1042 = vpop.f32.mrb[0].mxu0
  %v1043 = vadd.f32 0.0, %v1042
  %v1044 = vpop.f32.mrb[0].mxu0
  %v1045 = vadd.f32 0.0, %v1044
  %1046 = vmatprep.mubr.f32.mxu0 0.0
  %1047 = vmatmul.mubr.f32.gmra.mrb[0].mxu0 %v938
  %v1048 = vpop.f32.mrb[0].mxu0
  %v1049 = vadd.f32 0.0, %v1048
  %v1050 = vpop.f32.mrb[0].mxu0
  %v1051 = vadd.f32 0.0, %v1050
  %1052 = vdwg.mxu0
  %1053 = vst [vmem:[%s6] sm:$0xff] %v1007
  %1054 = vst [vmem:[%s6 + $0x8] sm:$0xff] %v1009
  %1055 = vst [vmem:[%s6 + $0x10] sm:$0xff] %v1013
  %1056 = vst [vmem:[%s6 + $0x18] sm:$0xff] %v1015
  %1057 = vst [vmem:[%s6 + $0x20] sm:$0xff] %v1019
  %1058 = vst [vmem:[%s6 + $0x28] sm:$0xff] %v1021
  %1059 = vst [vmem:[%s6 + $0x30] sm:$0xff] %v1025
  %1060 = vst [vmem:[%s6 + $0x38] sm:$0xff] %v1027
  %1061 = vst [vmem:[%s6 + $0x40] sm:$0xff] %v1031
  %1062 = vst [vmem:[%s6 + $0x48] sm:$0xff] %v1033
  %1063 = vst [vmem:[%s6 + $0x50] sm:$0xff] %v1037
  %1064 = vst [vmem:[%s6 + $0x58] sm:$0xff] %v1039
  %1065 = vst [vmem:[%s6 + $0x60] sm:$0xff] %v1043
  %1066 = vst [vmem:[%s6 + $0x68] sm:$0xff] %v1045
  %1067 = vst [vmem:[%s6 + $0x70] sm:$0xff] %v1049
  %1068 = vst [vmem:[%s6 + $0x78] sm:$0xff] %v1051
  // Predicated region
  $region26: #{s122_forward.1} parent=0 // pred_check
    _
  $region27: #{s122_forward.1} parent=0 // pred_check_branch
    %1070 = sbr.rel (0) target = $region29
  $region28: #{s122_forward.1} parent=0 // pred_region
    _
  $region29: #{s122_forward.1} parent=0 // pred_fallthru
    _
  // Predicated region
  $region30: #{s122_forward.1} parent=0 // pred_check
    _
  $region31: #{s122_forward.1} parent=0 // pred_check_branch
    %1072 = sbr.rel (0) target = $region33
  $region32: #{s122_forward.1} parent=0 // pred_region
    _
  $region33: #{s122_forward.1} parent=0 // pred_fallthru
    _

</llo_original>
